<compile_context>
chip_gen: v5e
topology: v5e:2x2
jax: 0.10.0
libtpu: 0.0.40
codegen_flags: <defaults>
</compile_context>

<pallas_src>
import functools

import numpy as np
import jax
import jax.numpy as jnp
from jax.experimental import pallas as pl
from jax.experimental.pallas import tpu as pltpu


def _round_up(a: int, b: int) -> int:
    return (a + b - 1) // b * b


def _soft_erosion_weight_np(kernel_size: int) -> np.ndarray:
    """Deterministic buffer construction, mirrors SoftErosion.__init__."""
    r = kernel_size // 2
    y_idx, x_idx = np.meshgrid(
        np.arange(kernel_size, dtype=np.float32),
        np.arange(kernel_size, dtype=np.float32),
        indexing="ij",
    )
    dist = np.sqrt((x_idx - r) ** 2 + (y_idx - r) ** 2)
    kernel = dist.max() - dist
    kernel = kernel / kernel.sum()
    return kernel.astype(np.float32)  # (K, K)


def _make_band_matrices(kernel_size: int, W: int, dtype) -> jnp.ndarray:
    """B[ki, c, j] = w[ki, c - j + r] for |c - j| <= r, else 0.

    The left/right zero padding of the column direction is baked into the border
    truncation, so the MXU contraction is exactly W wide and the input plane only
    needs row padding.
    """
    w = _soft_erosion_weight_np(kernel_size)
    K = kernel_size
    r = K // 2
    c = np.arange(W)[:, None]            # input column
    j = np.arange(W)[None, :]            # output column
    d = c - j + r                        # kernel column index
    valid = (d >= 0) & (d < K)
    d_clip = np.clip(d, 0, K - 1)
    bands = np.zeros((K, W, W), np.float32)
    for ki in range(K):
        bands[ki] = np.where(valid, w[ki][d_clip], 0.0)
    return jnp.asarray(bands, dtype=dtype)


def _soft_erosion_kernel(x_ref, band_ref, y_ref, bmax_ref, xpad_ref, *,
                         threshold, iterations, row_off):
    # x_ref:    (P, H, W)   bf16, VMEM  (input planes, no padding)
    # band_ref: (K, W, W)   bf16, VMEM  (banded weight matrices, resident)
    # y_ref:    (P, H, W)   f32,  VMEM  (final conv output)
    # bmax_ref: (1, 8, W)   f32,  VMEM  (per-block partial max of values < threshold)
    # xpad_ref: (P, Hp, W)  bf16, VMEM scratch (row-padded planes)
    P, H, W = x_ref.shape
    K = band_ref.shape[0]
    r = K // 2
    Hp = xpad_ref.shape[1]
    OFF = row_off                       # sublane-tile aligned interior row offset
    neg_inf = jnp.float32(-jnp.inf)
    lane_fold = (H % 8 == 0) and (H >= 8)

    if lane_fold:
        running_max = jnp.full((8, W), neg_inf, jnp.float32)
    else:
        running_max = neg_inf

    for p in range(P):
        # Zero ONLY the halo tiles (top OFF rows, bottom Hp-OFF-H rows); the
        # interior is overwritten right below.  Both regions are whole sublane
        # tiles, so these are unmasked stores.
        xpad_ref[p, 0:OFF, :] = jnp.zeros((OFF, W), xpad_ref.dtype)
        xpad_ref[p, OFF + H:Hp, :] = jnp.zeros((Hp - OFF - H, W), xpad_ref.dtype)
        # Interior write: bf16 block stored directly, tile- and lane-aligned.
        xpad_ref[p, OFF:OFF + H, :] = x_ref[p]

        cur = x_ref[p].astype(jnp.float32) if iterations > 1 else None
        for it in range(iterations):
            acc = jnp.zeros((H, W), jnp.float32)
            for ki in range(K):
                # K banded MXU matmuls replace the 225 shifted VPU taps.
                lo = ki + OFF - r
                acc = acc + jnp.dot(
                    xpad_ref[p, lo:lo + H, :],        # (H, W) bf16 row band
                    band_ref[ki],                     # (W, W) bf16 band matrix
                    preferred_element_type=jnp.float32,
                )
            if it + 1 < iterations:
                # Fused torch.min(x, conv2d(x)); refill the resident padded plane.
                cur = jnp.minimum(cur, acc)
                xpad_ref[p, OFF:OFF + H, :] = cur.astype(xpad_ref.dtype)
            else:
                cur = acc

        y_ref[p] = cur.astype(y_ref.dtype)

        # Partial max of values below threshold (only on the final conv result).
        masked = jnp.where(cur < threshold, cur, neg_inf)
        if lane_fold:
            part = masked[0:8, :]
            for b in range(1, H // 8):                # VPU-only folds; no XLU reduce
                part = jnp.maximum(part, masked[b * 8:(b + 1) * 8, :])
            running_max = jnp.maximum(running_max, part)
        else:
            running_max = jnp.maximum(running_max, jnp.max(masked))

    if lane_fold:
        bmax_ref[0] = running_max
    else:
        bmax_ref[...] = jnp.broadcast_to(running_max, bmax_ref.shape)


def soft_erosion(x, kernel_size: int = 15, threshold: float = 0.6,
                 iterations: int = 1, planes_per_step: int = 1,
                 compute_dtype=jnp.bfloat16):
    """JAX/Pallas equivalent of SoftErosion.forward. x: (N, C, H, W) float."""
    N, C, H, W = x.shape
    NC = N * C
    P = planes_per_step if (planes_per_step > 0 and NC % planes_per_step == 0) else 1
    G = NC // P
    K = kernel_size
    r = K // 2

    itemsize = jnp.dtype(compute_dtype).itemsize
    sub = 16 if itemsize == 2 else 8          # sublane rows per vreg tile
    row_off = max(_round_up(r, sub), sub if r > 0 else 0)
    assert row_off >= r
    Hp = _round_up(row_off + H + r, sub)

    bands = _make_band_matrices(K, W, compute_dtype)
    x_planes = x.reshape(NC, H, W).astype(compute_dtype)   # bf16: half the HBM read

    kern = functools.partial(_soft_erosion_kernel, threshold=float(threshold),
                             iterations=int(iterations), row_off=row_off)

    # VMEM budget guard (band matrices scale as K*W^2); only raise the scoped limit
    # when the default would be exceeded, and never above v7x's physical 64 MiB.
    vmem_est = (2 * K * W * W * itemsize          # bands (assume double-buffered)
                + 2 * P * H * W * itemsize        # x input blocks
                + 2 * P * H * W * 4               # y output blocks
                + P * Hp * W * itemsize           # xpad scratch
                + 2 * 8 * W * 4)                  # bmax blocks
    vmem_limit = None if vmem_est < (24 << 20) else min(2 * vmem_est, 60 << 20)

    y, bmax = pl.pallas_call(
        kern,
        out_shape=(
            jax.ShapeDtypeStruct((NC, H, W), jnp.float32),
            jax.ShapeDtypeStruct((G, 8, W), jnp.float32),
        ),
        grid_spec=pltpu.PrefetchScalarGridSpec(
            num_scalar_prefetch=0,
            grid=(G,),
            in_specs=[
                # P planes per step (block last two dims equal the full array dims).
                pl.BlockSpec((P, H, W), lambda n: (n, 0, 0)),
                # Band matrices: same block every step -> stays resident in VMEM.
                pl.BlockSpec((K, W, W), lambda n: (0, 0, 0)),
            ],
            out_specs=[
                pl.BlockSpec((P, H, W), lambda n: (n, 0, 0)),
                pl.BlockSpec((1, 8, W), lambda n: (n, 0, 0)),
            ],
            scratch_shapes=[pltpu.VMEM((P, Hp, W), compute_dtype)],
        ),
        compiler_params=pltpu.CompilerParams(
            dimension_semantics=("parallel",),
            vmem_limit_bytes=vmem_limit,
        ),
    )(x_planes, bands)

    # Epilogue: mask = y >= threshold ; y[mask] = 1 ; y[~mask] /= max(y[~mask]) + 1e-7.
    # The unmasked max comes from tiny per-block partial maxima emitted by the kernel.
    # NOTE: if every pixel is masked, PyTorch raises (max of empty tensor); here we
    # substitute 1.0 -- acknowledged semantic difference.
    mask = y >= threshold
    unmasked_max = jnp.max(bmax)
    unmasked_max = jnp.where(jnp.isfinite(unmasked_max), unmasked_max,
                             jnp.float32(1.0))
    out = jnp.where(mask, jnp.float32(1.0), y / (unmasked_max + jnp.float32(1e-7)))
    return out.reshape(N, C, H, W), mask.reshape(N, C, H, W)


def _reference_soft_erosion(x, kernel_size, threshold, iterations):
    """Pure-JAX reference (f32, HIGHEST precision) for a tolerant numeric check."""
    w = jnp.asarray(_soft_erosion_weight_np(kernel_size))[None, None]  # (1,1,K,K)
    r = kernel_size // 2

    def conv(z):
        return jax.lax.conv_general_dilated(
            z, w, window_strides=(1, 1), padding=[(r, r), (r, r)],
            dimension_numbers=("NCHW", "OIHW", "NCHW"),
            precision=jax.lax.Precision.HIGHEST)

    y = x.astype(jnp.float32)
    for _ in range(iterations - 1):
        y = jnp.minimum(y, conv(y))
    y = conv(y)
    mask = y >= threshold
    um = jnp.max(jnp.where(mask, -jnp.inf, y))
    um = jnp.where(jnp.isfinite(um), um, jnp.float32(1.0))
    out = jnp.where(mask, jnp.float32(1.0), y / (um + jnp.float32(1e-7)))
    return out, mask


if __name__ == "__main__":
    key = jax.random.PRNGKey(0)
    # C=1 matches the groups=C / out_channels=1 constraint of the PyTorch module;
    # H=W=128 keeps input/output/band blocks lane-dense.
    x = jax.random.uniform(key, (2, 1, 128, 128), dtype=jnp.float32)

    run1 = jax.jit(functools.partial(soft_erosion, kernel_size=15,
                                     threshold=0.6, iterations=1))
    out, mask = run1(x)
    jax.block_until_ready((out, mask))
    assert out.shape == x.shape and mask.shape == x.shape
    assert out.dtype == jnp.float32 and mask.dtype == jnp.bool_

    ref_out, _ = _reference_soft_erosion(x, 15, 0.6, 1)
    err = float(jnp.max(jnp.abs(out - ref_out)))
    assert err < 5e-2, f"iterations=1 max abs err {err}"

    # Exercise the fused in-kernel iterations path (min(x, conv(x)) in VMEM).
    run2 = jax.jit(functools.partial(soft_erosion, kernel_size=15,
                                     threshold=0.6, iterations=2))
    out2, mask2 = run2(x)
    jax.block_until_ready((out2, mask2))
    ref_out2, _ = _reference_soft_erosion(x, 15, 0.6, 2)
    err2 = float(jnp.max(jnp.abs(out2 - ref_out2)))
    assert err2 < 5e-2, f"iterations=2 max abs err {err2}"

    print("KERNEL_OK")
</pallas_src>

<mosaic_0001>
module attributes {stable_mosaic.version = 11 : i64} {
  func.func @_soft_erosion_kernel(%arg0: i32, %arg1: memref<1x128x128xbf16, #tpu.memory_space<vmem>>, %arg2: memref<15x128x128xbf16, #tpu.memory_space<vmem>>, %arg3: memref<1x128x128xf32, #tpu.memory_space<vmem>>, %arg4: memref<1x8x128xf32, #tpu.memory_space<vmem>>, %arg5: memref<1x160x128xbf16, #tpu.memory_space<vmem>>) attributes {dimension_semantics = [#tpu.dimension_semantics<parallel>], iteration_bounds = array<i64: 2>, scalar_prefetch = 0 : i64, scratch_operands = 1 : i64, tpu.core_type = #tpu.core_type<tc>, window_params = [{transform_indices = @transform_0, window_bounds = array<i64: 1, 128, 128>}, {pipeline_mode = #tpu.pipeline_mode<synchronous>, transform_indices = @transform_1, window_bounds = array<i64: 15, 128, 128>}, {transform_indices = @transform_2, window_bounds = array<i64: 1, 128, 128>}, {transform_indices = @transform_3, window_bounds = array<i64: 1, 8, 128>}]} {
    %cst = arith.constant 0xFF800000 : f32
    %0 = vector.broadcast %cst : f32 to vector<8x128xf32>
    %cst_0 = arith.constant 0.000000e+00 : bf16
    %1 = vector.broadcast %cst_0 : bf16 to vector<16x128xbf16>
    %c0 = arith.constant 0 : index
    %c0_1 = arith.constant 0 : index
    %c0_2 = arith.constant 0 : index
    %2 = vector.load %arg5[%c0, %c0_1, %c0_2] : memref<1x160x128xbf16, #tpu.memory_space<vmem>>, vector<1x16x128xbf16>
    %3 = vector.shape_cast %2 : vector<1x16x128xbf16> to vector<16x128xbf16>
    %4 = vector.shape_cast %1 : vector<16x128xbf16> to vector<1x16x128xbf16>
    tpu.vector_store %arg5[%c0, %c0_1, %c0_2], %4 {strides = array<i32>} : memref<1x160x128xbf16, #tpu.memory_space<vmem>>, vector<1x16x128xbf16>,
    %cst_3 = arith.constant 0.000000e+00 : bf16
    %5 = vector.broadcast %cst_3 : bf16 to vector<16x128xbf16>
    %c0_4 = arith.constant 0 : index
    %c144 = arith.constant 144 : index
    %c0_5 = arith.constant 0 : index
    %6 = vector.load %arg5[%c0_4, %c144, %c0_5] : memref<1x160x128xbf16, #tpu.memory_space<vmem>>, vector<1x16x128xbf16>
    %7 = vector.shape_cast %6 : vector<1x16x128xbf16> to vector<16x128xbf16>
    %8 = vector.shape_cast %5 : vector<16x128xbf16> to vector<1x16x128xbf16>
    tpu.vector_store %arg5[%c0_4, %c144, %c0_5], %8 {strides = array<i32>} : memref<1x160x128xbf16, #tpu.memory_space<vmem>>, vector<1x16x128xbf16>,
    %c0_6 = arith.constant 0 : index
    %c0_7 = arith.constant 0 : index
    %c0_8 = arith.constant 0 : index
    %9 = vector.load %arg1[%c0_6, %c0_7, %c0_8] : memref<1x128x128xbf16, #tpu.memory_space<vmem>>, vector<1x128x128xbf16>
    %10 = vector.shape_cast %9 : vector<1x128x128xbf16> to vector<128x128xbf16>
    %c0_9 = arith.constant 0 : index
    %c16 = arith.constant 16 : index
    %c0_10 = arith.constant 0 : index
    %11 = vector.load %arg5[%c0_9, %c16, %c0_10] : memref<1x160x128xbf16, #tpu.memory_space<vmem>>, vector<1x128x128xbf16>
    %12 = vector.shape_cast %11 : vector<1x128x128xbf16> to vector<128x128xbf16>
    %13 = vector.shape_cast %10 : vector<128x128xbf16> to vector<1x128x128xbf16>
    tpu.vector_store %arg5[%c0_9, %c16, %c0_10], %13 {strides = array<i32>} : memref<1x160x128xbf16, #tpu.memory_space<vmem>>, vector<1x128x128xbf16>,
    %cst_11 = arith.constant 0.000000e+00 : f32
    %14 = vector.broadcast %cst_11 : f32 to vector<128x128xf32>
    %c0_12 = arith.constant 0 : index
    %c9 = arith.constant 9 : index
    %c0_13 = arith.constant 0 : index
    %15 = vector.load %arg5[%c0_12, %c9, %c0_13] : memref<1x160x128xbf16, #tpu.memory_space<vmem>>, vector<1x128x128xbf16>
    %16 = vector.shape_cast %15 : vector<1x128x128xbf16> to vector<128x128xbf16>
    %c0_14 = arith.constant 0 : index
    %c0_15 = arith.constant 0 : index
    %c0_16 = arith.constant 0 : index
    %17 = vector.load %arg2[%c0_14, %c0_15, %c0_16] : memref<15x128x128xbf16, #tpu.memory_space<vmem>>, vector<1x128x128xbf16>
    %18 = vector.shape_cast %17 : vector<1x128x128xbf16> to vector<128x128xbf16>
    %cst_17 = arith.constant dense<0.000000e+00> : vector<128x128xf32>
    %19 = tpu.matmul %16, %18, %cst_17 {dimension_numbers = #tpu.dot_dimension_numbers<[1], [0], [0], [1], [0, 0, 1, 1], [], []>} : vector<128x128xbf16>, vector<128x128xbf16>, vector<128x128xf32> -> vector<128x128xf32>
    %20 = arith.addf %14, %19 : vector<128x128xf32>
    %c0_18 = arith.constant 0 : index
    %c10 = arith.constant 10 : index
    %c0_19 = arith.constant 0 : index
    %21 = vector.load %arg5[%c0_18, %c10, %c0_19] : memref<1x160x128xbf16, #tpu.memory_space<vmem>>, vector<1x128x128xbf16>
    %22 = vector.shape_cast %21 : vector<1x128x128xbf16> to vector<128x128xbf16>
    %c1 = arith.constant 1 : index
    %c0_20 = arith.constant 0 : index
    %c0_21 = arith.constant 0 : index
    %23 = vector.load %arg2[%c1, %c0_20, %c0_21] : memref<15x128x128xbf16, #tpu.memory_space<vmem>>, vector<1x128x128xbf16>
    %24 = vector.shape_cast %23 : vector<1x128x128xbf16> to vector<128x128xbf16>
    %cst_22 = arith.constant dense<0.000000e+00> : vector<128x128xf32>
    %25 = tpu.matmul %22, %24, %cst_22 {dimension_numbers = #tpu.dot_dimension_numbers<[1], [0], [0], [1], [0, 0, 1, 1], [], []>} : vector<128x128xbf16>, vector<128x128xbf16>, vector<128x128xf32> -> vector<128x128xf32>
    %26 = arith.addf %20, %25 : vector<128x128xf32>
    %c0_23 = arith.constant 0 : index
    %c11 = arith.constant 11 : index
    %c0_24 = arith.constant 0 : index
    %27 = vector.load %arg5[%c0_23, %c11, %c0_24] : memref<1x160x128xbf16, #tpu.memory_space<vmem>>, vector<1x128x128xbf16>
    %28 = vector.shape_cast %27 : vector<1x128x128xbf16> to vector<128x128xbf16>
    %c2 = arith.constant 2 : index
    %c0_25 = arith.constant 0 : index
    %c0_26 = arith.constant 0 : index
    %29 = vector.load %arg2[%c2, %c0_25, %c0_26] : memref<15x128x128xbf16, #tpu.memory_space<vmem>>, vector<1x128x128xbf16>
    %30 = vector.shape_cast %29 : vector<1x128x128xbf16> to vector<128x128xbf16>
    %cst_27 = arith.constant dense<0.000000e+00> : vector<128x128xf32>
    %31 = tpu.matmul %28, %30, %cst_27 {dimension_numbers = #tpu.dot_dimension_numbers<[1], [0], [0], [1], [0, 0, 1, 1], [], []>} : vector<128x128xbf16>, vector<128x128xbf16>, vector<128x128xf32> -> vector<128x128xf32>
    %32 = arith.addf %26, %31 : vector<128x128xf32>
    %c0_28 = arith.constant 0 : index
    %c12 = arith.constant 12 : index
    %c0_29 = arith.constant 0 : index
    %33 = vector.load %arg5[%c0_28, %c12, %c0_29] : memref<1x160x128xbf16, #tpu.memory_space<vmem>>, vector<1x128x128xbf16>
    %34 = vector.shape_cast %33 : vector<1x128x128xbf16> to vector<128x128xbf16>
    %c3 = arith.constant 3 : index
    %c0_30 = arith.constant 0 : index
    %c0_31 = arith.constant 0 : index
    %35 = vector.load %arg2[%c3, %c0_30, %c0_31] : memref<15x128x128xbf16, #tpu.memory_space<vmem>>, vector<1x128x128xbf16>
    %36 = vector.shape_cast %35 : vector<1x128x128xbf16> to vector<128x128xbf16>
    %cst_32 = arith.constant dense<0.000000e+00> : vector<128x128xf32>
    %37 = tpu.matmul %34, %36, %cst_32 {dimension_numbers = #tpu.dot_dimension_numbers<[1], [0], [0], [1], [0, 0, 1, 1], [], []>} : vector<128x128xbf16>, vector<128x128xbf16>, vector<128x128xf32> -> vector<128x128xf32>
    %38 = arith.addf %32, %37 : vector<128x128xf32>
    %c0_33 = arith.constant 0 : index
    %c13 = arith.constant 13 : index
    %c0_34 = arith.constant 0 : index
    %39 = vector.load %arg5[%c0_33, %c13, %c0_34] : memref<1x160x128xbf16, #tpu.memory_space<vmem>>, vector<1x128x128xbf16>
    %40 = vector.shape_cast %39 : vector<1x128x128xbf16> to vector<128x128xbf16>
    %c4 = arith.constant 4 : index
    %c0_35 = arith.constant 0 : index
    %c0_36 = arith.constant 0 : index
    %41 = vector.load %arg2[%c4, %c0_35, %c0_36] : memref<15x128x128xbf16, #tpu.memory_space<vmem>>, vector<1x128x128xbf16>
    %42 = vector.shape_cast %41 : vector<1x128x128xbf16> to vector<128x128xbf16>
    %cst_37 = arith.constant dense<0.000000e+00> : vector<128x128xf32>
    %43 = tpu.matmul %40, %42, %cst_37 {dimension_numbers = #tpu.dot_dimension_numbers<[1], [0], [0], [1], [0, 0, 1, 1], [], []>} : vector<128x128xbf16>, vector<128x128xbf16>, vector<128x128xf32> -> vector<128x128xf32>
    %44 = arith.addf %38, %43 : vector<128x128xf32>
    %c0_38 = arith.constant 0 : index
    %c14 = arith.constant 14 : index
    %c0_39 = arith.constant 0 : index
    %45 = vector.load %arg5[%c0_38, %c14, %c0_39] : memref<1x160x128xbf16, #tpu.memory_space<vmem>>, vector<1x128x128xbf16>
    %46 = vector.shape_cast %45 : vector<1x128x128xbf16> to vector<128x128xbf16>
    %c5 = arith.constant 5 : index
    %c0_40 = arith.constant 0 : index
    %c0_41 = arith.constant 0 : index
    %47 = vector.load %arg2[%c5, %c0_40, %c0_41] : memref<15x128x128xbf16, #tpu.memory_space<vmem>>, vector<1x128x128xbf16>
    %48 = vector.shape_cast %47 : vector<1x128x128xbf16> to vector<128x128xbf16>
    %cst_42 = arith.constant dense<0.000000e+00> : vector<128x128xf32>
    %49 = tpu.matmul %46, %48, %cst_42 {dimension_numbers = #tpu.dot_dimension_numbers<[1], [0], [0], [1], [0, 0, 1, 1], [], []>} : vector<128x128xbf16>, vector<128x128xbf16>, vector<128x128xf32> -> vector<128x128xf32>
    %50 = arith.addf %44, %49 : vector<128x128xf32>
    %c0_43 = arith.constant 0 : index
    %c15 = arith.constant 15 : index
    %c0_44 = arith.constant 0 : index
    %51 = vector.load %arg5[%c0_43, %c15, %c0_44] : memref<1x160x128xbf16, #tpu.memory_space<vmem>>, vector<1x128x128xbf16>
    %52 = vector.shape_cast %51 : vector<1x128x128xbf16> to vector<128x128xbf16>
    %c6 = arith.constant 6 : index
    %c0_45 = arith.constant 0 : index
    %c0_46 = arith.constant 0 : index
    %53 = vector.load %arg2[%c6, %c0_45, %c0_46] : memref<15x128x128xbf16, #tpu.memory_space<vmem>>, vector<1x128x128xbf16>
    %54 = vector.shape_cast %53 : vector<1x128x128xbf16> to vector<128x128xbf16>
    %cst_47 = arith.constant dense<0.000000e+00> : vector<128x128xf32>
    %55 = tpu.matmul %52, %54, %cst_47 {dimension_numbers = #tpu.dot_dimension_numbers<[1], [0], [0], [1], [0, 0, 1, 1], [], []>} : vector<128x128xbf16>, vector<128x128xbf16>, vector<128x128xf32> -> vector<128x128xf32>
    %56 = arith.addf %50, %55 : vector<128x128xf32>
    %c0_48 = arith.constant 0 : index
    %c16_49 = arith.constant 16 : index
    %c0_50 = arith.constant 0 : index
    %57 = vector.load %arg5[%c0_48, %c16_49, %c0_50] : memref<1x160x128xbf16, #tpu.memory_space<vmem>>, vector<1x128x128xbf16>
    %58 = vector.shape_cast %57 : vector<1x128x128xbf16> to vector<128x128xbf16>
    %c7 = arith.constant 7 : index
    %c0_51 = arith.constant 0 : index
    %c0_52 = arith.constant 0 : index
    %59 = vector.load %arg2[%c7, %c0_51, %c0_52] : memref<15x128x128xbf16, #tpu.memory_space<vmem>>, vector<1x128x128xbf16>
    %60 = vector.shape_cast %59 : vector<1x128x128xbf16> to vector<128x128xbf16>
    %cst_53 = arith.constant dense<0.000000e+00> : vector<128x128xf32>
    %61 = tpu.matmul %58, %60, %cst_53 {dimension_numbers = #tpu.dot_dimension_numbers<[1], [0], [0], [1], [0, 0, 1, 1], [], []>} : vector<128x128xbf16>, vector<128x128xbf16>, vector<128x128xf32> -> vector<128x128xf32>
    %62 = arith.addf %56, %61 : vector<128x128xf32>
    %c0_54 = arith.constant 0 : index
    %c17 = arith.constant 17 : index
    %c0_55 = arith.constant 0 : index
    %63 = vector.load %arg5[%c0_54, %c17, %c0_55] : memref<1x160x128xbf16, #tpu.memory_space<vmem>>, vector<1x128x128xbf16>
    %64 = vector.shape_cast %63 : vector<1x128x128xbf16> to vector<128x128xbf16>
    %c8 = arith.constant 8 : index
    %c0_56 = arith.constant 0 : index
    %c0_57 = arith.constant 0 : index
    %65 = vector.load %arg2[%c8, %c0_56, %c0_57] : memref<15x128x128xbf16, #tpu.memory_space<vmem>>, vector<1x128x128xbf16>
    %66 = vector.shape_cast %65 : vector<1x128x128xbf16> to vector<128x128xbf16>
    %cst_58 = arith.constant dense<0.000000e+00> : vector<128x128xf32>
    %67 = tpu.matmul %64, %66, %cst_58 {dimension_numbers = #tpu.dot_dimension_numbers<[1], [0], [0], [1], [0, 0, 1, 1], [], []>} : vector<128x128xbf16>, vector<128x128xbf16>, vector<128x128xf32> -> vector<128x128xf32>
    %68 = arith.addf %62, %67 : vector<128x128xf32>
    %c0_59 = arith.constant 0 : index
    %c18 = arith.constant 18 : index
    %c0_60 = arith.constant 0 : index
    %69 = vector.load %arg5[%c0_59, %c18, %c0_60] : memref<1x160x128xbf16, #tpu.memory_space<vmem>>, vector<1x128x128xbf16>
    %70 = vector.shape_cast %69 : vector<1x128x128xbf16> to vector<128x128xbf16>
    %c9_61 = arith.constant 9 : index
    %c0_62 = arith.constant 0 : index
    %c0_63 = arith.constant 0 : index
    %71 = vector.load %arg2[%c9_61, %c0_62, %c0_63] : memref<15x128x128xbf16, #tpu.memory_space<vmem>>, vector<1x128x128xbf16>
    %72 = vector.shape_cast %71 : vector<1x128x128xbf16> to vector<128x128xbf16>
    %cst_64 = arith.constant dense<0.000000e+00> : vector<128x128xf32>
    %73 = tpu.matmul %70, %72, %cst_64 {dimension_numbers = #tpu.dot_dimension_numbers<[1], [0], [0], [1], [0, 0, 1, 1], [], []>} : vector<128x128xbf16>, vector<128x128xbf16>, vector<128x128xf32> -> vector<128x128xf32>
    %74 = arith.addf %68, %73 : vector<128x128xf32>
    %c0_65 = arith.constant 0 : index
    %c19 = arith.constant 19 : index
    %c0_66 = arith.constant 0 : index
    %75 = vector.load %arg5[%c0_65, %c19, %c0_66] : memref<1x160x128xbf16, #tpu.memory_space<vmem>>, vector<1x128x128xbf16>
    %76 = vector.shape_cast %75 : vector<1x128x128xbf16> to vector<128x128xbf16>
    %c10_67 = arith.constant 10 : index
    %c0_68 = arith.constant 0 : index
    %c0_69 = arith.constant 0 : index
    %77 = vector.load %arg2[%c10_67, %c0_68, %c0_69] : memref<15x128x128xbf16, #tpu.memory_space<vmem>>, vector<1x128x128xbf16>
    %78 = vector.shape_cast %77 : vector<1x128x128xbf16> to vector<128x128xbf16>
    %cst_70 = arith.constant dense<0.000000e+00> : vector<128x128xf32>
    %79 = tpu.matmul %76, %78, %cst_70 {dimension_numbers = #tpu.dot_dimension_numbers<[1], [0], [0], [1], [0, 0, 1, 1], [], []>} : vector<128x128xbf16>, vector<128x128xbf16>, vector<128x128xf32> -> vector<128x128xf32>
    %80 = arith.addf %74, %79 : vector<128x128xf32>
    %c0_71 = arith.constant 0 : index
    %c20 = arith.constant 20 : index
    %c0_72 = arith.constant 0 : index
    %81 = vector.load %arg5[%c0_71, %c20, %c0_72] : memref<1x160x128xbf16, #tpu.memory_space<vmem>>, vector<1x128x128xbf16>
    %82 = vector.shape_cast %81 : vector<1x128x128xbf16> to vector<128x128xbf16>
    %c11_73 = arith.constant 11 : index
    %c0_74 = arith.constant 0 : index
    %c0_75 = arith.constant 0 : index
    %83 = vector.load %arg2[%c11_73, %c0_74, %c0_75] : memref<15x128x128xbf16, #tpu.memory_space<vmem>>, vector<1x128x128xbf16>
    %84 = vector.shape_cast %83 : vector<1x128x128xbf16> to vector<128x128xbf16>
    %cst_76 = arith.constant dense<0.000000e+00> : vector<128x128xf32>
    %85 = tpu.matmul %82, %84, %cst_76 {dimension_numbers = #tpu.dot_dimension_numbers<[1], [0], [0], [1], [0, 0, 1, 1], [], []>} : vector<128x128xbf16>, vector<128x128xbf16>, vector<128x128xf32> -> vector<128x128xf32>
    %86 = arith.addf %80, %85 : vector<128x128xf32>
    %c0_77 = arith.constant 0 : index
    %c21 = arith.constant 21 : index
    %c0_78 = arith.constant 0 : index
    %87 = vector.load %arg5[%c0_77, %c21, %c0_78] : memref<1x160x128xbf16, #tpu.memory_space<vmem>>, vector<1x128x128xbf16>
    %88 = vector.shape_cast %87 : vector<1x128x128xbf16> to vector<128x128xbf16>
    %c12_79 = arith.constant 12 : index
    %c0_80 = arith.constant 0 : index
    %c0_81 = arith.constant 0 : index
    %89 = vector.load %arg2[%c12_79, %c0_80, %c0_81] : memref<15x128x128xbf16, #tpu.memory_space<vmem>>, vector<1x128x128xbf16>
    %90 = vector.shape_cast %89 : vector<1x128x128xbf16> to vector<128x128xbf16>
    %cst_82 = arith.constant dense<0.000000e+00> : vector<128x128xf32>
    %91 = tpu.matmul %88, %90, %cst_82 {dimension_numbers = #tpu.dot_dimension_numbers<[1], [0], [0], [1], [0, 0, 1, 1], [], []>} : vector<128x128xbf16>, vector<128x128xbf16>, vector<128x128xf32> -> vector<128x128xf32>
    %92 = arith.addf %86, %91 : vector<128x128xf32>
    %c0_83 = arith.constant 0 : index
    %c22 = arith.constant 22 : index
    %c0_84 = arith.constant 0 : index
    %93 = vector.load %arg5[%c0_83, %c22, %c0_84] : memref<1x160x128xbf16, #tpu.memory_space<vmem>>, vector<1x128x128xbf16>
    %94 = vector.shape_cast %93 : vector<1x128x128xbf16> to vector<128x128xbf16>
    %c13_85 = arith.constant 13 : index
    %c0_86 = arith.constant 0 : index
    %c0_87 = arith.constant 0 : index
    %95 = vector.load %arg2[%c13_85, %c0_86, %c0_87] : memref<15x128x128xbf16, #tpu.memory_space<vmem>>, vector<1x128x128xbf16>
    %96 = vector.shape_cast %95 : vector<1x128x128xbf16> to vector<128x128xbf16>
    %cst_88 = arith.constant dense<0.000000e+00> : vector<128x128xf32>
    %97 = tpu.matmul %94, %96, %cst_88 {dimension_numbers = #tpu.dot_dimension_numbers<[1], [0], [0], [1], [0, 0, 1, 1], [], []>} : vector<128x128xbf16>, vector<128x128xbf16>, vector<128x128xf32> -> vector<128x128xf32>
    %98 = arith.addf %92, %97 : vector<128x128xf32>
    %c0_89 = arith.constant 0 : index
    %c23 = arith.constant 23 : index
    %c0_90 = arith.constant 0 : index
    %99 = vector.load %arg5[%c0_89, %c23, %c0_90] : memref<1x160x128xbf16, #tpu.memory_space<vmem>>, vector<1x128x128xbf16>
    %100 = vector.shape_cast %99 : vector<1x128x128xbf16> to vector<128x128xbf16>
    %c14_91 = arith.constant 14 : index
    %c0_92 = arith.constant 0 : index
    %c0_93 = arith.constant 0 : index
    %101 = vector.load %arg2[%c14_91, %c0_92, %c0_93] : memref<15x128x128xbf16, #tpu.memory_space<vmem>>, vector<1x128x128xbf16>
    %102 = vector.shape_cast %101 : vector<1x128x128xbf16> to vector<128x128xbf16>
    %cst_94 = arith.constant dense<0.000000e+00> : vector<128x128xf32>
    %103 = tpu.matmul %100, %102, %cst_94 {dimension_numbers = #tpu.dot_dimension_numbers<[1], [0], [0], [1], [0, 0, 1, 1], [], []>} : vector<128x128xbf16>, vector<128x128xbf16>, vector<128x128xf32> -> vector<128x128xf32>
    %104 = arith.addf %98, %103 : vector<128x128xf32>
    %c0_95 = arith.constant 0 : index
    %c0_96 = arith.constant 0 : index
    %c0_97 = arith.constant 0 : index
    %105 = vector.load %arg3[%c0_95, %c0_96, %c0_97] : memref<1x128x128xf32, #tpu.memory_space<vmem>>, vector<1x128x128xf32>
    %106 = vector.shape_cast %105 : vector<1x128x128xf32> to vector<128x128xf32>
    %107 = vector.shape_cast %104 : vector<128x128xf32> to vector<1x128x128xf32>
    tpu.vector_store %arg3[%c0_95, %c0_96, %c0_97], %107 {strides = array<i32>} : memref<1x128x128xf32, #tpu.memory_space<vmem>>, vector<1x128x128xf32>,
    %cst_98 = arith.constant 6.000000e-01 : f32
    %108 = vector.broadcast %cst_98 : f32 to vector<128x128xf32>
    %109 = arith.cmpf olt, %104, %108 : vector<128x128xf32>
    %cst_99 = arith.constant 0xFF800000 : f32
    %110 = vector.broadcast %cst_99 : f32 to vector<128x128xf32>
    %111 = arith.select %109, %104, %110 : vector<128x128xi1>, vector<128x128xf32>
    %112 = vector.extract_strided_slice %111 {offsets = [0, 0], sizes = [8, 128], strides = [1, 1]} : vector<128x128xf32> to vector<8x128xf32>
    %113 = vector.extract_strided_slice %111 {offsets = [8, 0], sizes = [8, 128], strides = [1, 1]} : vector<128x128xf32> to vector<8x128xf32>
    %114 = arith.maximumf %112, %113 : vector<8x128xf32>
    %115 = vector.extract_strided_slice %111 {offsets = [16, 0], sizes = [8, 128], strides = [1, 1]} : vector<128x128xf32> to vector<8x128xf32>
    %116 = arith.maximumf %114, %115 : vector<8x128xf32>
    %117 = vector.extract_strided_slice %111 {offsets = [24, 0], sizes = [8, 128], strides = [1, 1]} : vector<128x128xf32> to vector<8x128xf32>
    %118 = arith.maximumf %116, %117 : vector<8x128xf32>
    %119 = vector.extract_strided_slice %111 {offsets = [32, 0], sizes = [8, 128], strides = [1, 1]} : vector<128x128xf32> to vector<8x128xf32>
    %120 = arith.maximumf %118, %119 : vector<8x128xf32>
    %121 = vector.extract_strided_slice %111 {offsets = [40, 0], sizes = [8, 128], strides = [1, 1]} : vector<128x128xf32> to vector<8x128xf32>
    %122 = arith.maximumf %120, %121 : vector<8x128xf32>
    %123 = vector.extract_strided_slice %111 {offsets = [48, 0], sizes = [8, 128], strides = [1, 1]} : vector<128x128xf32> to vector<8x128xf32>
    %124 = arith.maximumf %122, %123 : vector<8x128xf32>
    %125 = vector.extract_strided_slice %111 {offsets = [56, 0], sizes = [8, 128], strides = [1, 1]} : vector<128x128xf32> to vector<8x128xf32>
    %126 = arith.maximumf %124, %125 : vector<8x128xf32>
    %127 = vector.extract_strided_slice %111 {offsets = [64, 0], sizes = [8, 128], strides = [1, 1]} : vector<128x128xf32> to vector<8x128xf32>
    %128 = arith.maximumf %126, %127 : vector<8x128xf32>
    %129 = vector.extract_strided_slice %111 {offsets = [72, 0], sizes = [8, 128], strides = [1, 1]} : vector<128x128xf32> to vector<8x128xf32>
    %130 = arith.maximumf %128, %129 : vector<8x128xf32>
    %131 = vector.extract_strided_slice %111 {offsets = [80, 0], sizes = [8, 128], strides = [1, 1]} : vector<128x128xf32> to vector<8x128xf32>
    %132 = arith.maximumf %130, %131 : vector<8x128xf32>
    %133 = vector.extract_strided_slice %111 {offsets = [88, 0], sizes = [8, 128], strides = [1, 1]} : vector<128x128xf32> to vector<8x128xf32>
    %134 = arith.maximumf %132, %133 : vector<8x128xf32>
    %135 = vector.extract_strided_slice %111 {offsets = [96, 0], sizes = [8, 128], strides = [1, 1]} : vector<128x128xf32> to vector<8x128xf32>
    %136 = arith.maximumf %134, %135 : vector<8x128xf32>
    %137 = vector.extract_strided_slice %111 {offsets = [104, 0], sizes = [8, 128], strides = [1, 1]} : vector<128x128xf32> to vector<8x128xf32>
    %138 = arith.maximumf %136, %137 : vector<8x128xf32>
    %139 = vector.extract_strided_slice %111 {offsets = [112, 0], sizes = [8, 128], strides = [1, 1]} : vector<128x128xf32> to vector<8x128xf32>
    %140 = arith.maximumf %138, %139 : vector<8x128xf32>
    %141 = vector.extract_strided_slice %111 {offsets = [120, 0], sizes = [8, 128], strides = [1, 1]} : vector<128x128xf32> to vector<8x128xf32>
    %142 = arith.maximumf %140, %141 : vector<8x128xf32>
    %143 = arith.maximumf %0, %142 : vector<8x128xf32>
    %c0_100 = arith.constant 0 : index
    %c0_101 = arith.constant 0 : index
    %c0_102 = arith.constant 0 : index
    %144 = vector.load %arg4[%c0_100, %c0_101, %c0_102] : memref<1x8x128xf32, #tpu.memory_space<vmem>>, vector<1x8x128xf32>
    %145 = vector.shape_cast %144 : vector<1x8x128xf32> to vector<8x128xf32>
    %146 = vector.shape_cast %143 : vector<8x128xf32> to vector<1x8x128xf32>
    tpu.vector_store %arg4[%c0_100, %c0_101, %c0_102], %146 {strides = array<i32>} : memref<1x8x128xf32, #tpu.memory_space<vmem>>, vector<1x8x128xf32>,
    return
  }
  func.func @transform_0(%arg0: i32) -> (i32, i32, i32) {
    %c0_i32 = arith.constant 0 : i32
    %c0_i32_0 = arith.constant 0 : i32
    %c0_i32_1 = arith.constant 0 : i32
    return %arg0, %c0_i32, %c0_i32_0 : i32, i32, i32
  }
  func.func @transform_1(%arg0: i32) -> (i32, i32, i32) {
    %c0_i32 = arith.constant 0 : i32
    %c0_i32_0 = arith.constant 0 : i32
    %c0_i32_1 = arith.constant 0 : i32
    %c0_i32_2 = arith.constant 0 : i32
    return %c0_i32, %c0_i32_0, %c0_i32_1 : i32, i32, i32
  }
  func.func @transform_2(%arg0: i32) -> (i32, i32, i32) {
    %c0_i32 = arith.constant 0 : i32
    %c0_i32_0 = arith.constant 0 : i32
    %c0_i32_1 = arith.constant 0 : i32
    return %arg0, %c0_i32, %c0_i32_0 : i32, i32, i32
  }
  func.func @transform_3(%arg0: i32) -> (i32, i32, i32) {
    %c0_i32 = arith.constant 0 : i32
    %c0_i32_0 = arith.constant 0 : i32
    %c0_i32_1 = arith.constant 0 : i32
    return %arg0, %c0_i32, %c0_i32_0 : i32, i32, i32
  }
}

</mosaic_0001>

<llo_original>
// kernel: soft_erosion.1
$region0: #{soft_erosion.1}
  #allocation0 [shape = 'u32[]', space=smem, size = 0x4, offset = 0x4, fixed_abs, tag = 'smem constant byte address 0x4 - core index']
  #allocation1 [shape = 'u32[72,128]{1,0:T(1,128)}', space=vmem, size = 0x9000, scoped, tag = 'internal scratch']
  #allocation2 [shape = 'bf16[1,160,128]{2,1,0:T(8,128)(2,1)}', space=vmem, size = 0xa000, scoped, tag = 'scratch operand']
  %s0 = inlined_call_operand.vmem [shape: bf16[2,128,128], index: 0, kind: input, shape index: {}]
  %s1 = inlined_call_operand.hbm [shape: bf16[15,128,128], index: 1, kind: input, shape index: {}]
  %s2 = inlined_call_operand.vmem [shape: f32[2,128,128], index: 2, kind: output, shape index: {0}]
  %s3 = inlined_call_operand.vmem [shape: f32[2,8,128], index: 3, kind: output, shape index: {1}]
  %4 = xla_tuple %s2, %s3
  %s5 = sld [smem:[#allocation0]]
  $region53: #{soft_erosion.1} parent=0
    _
  %s7 = ssub.s32 1, %s5
  %s8 = scalar_select 0, %s7, %s5
  $region1: #{soft_erosion.1} parent=0
    #allocation3 [shape = 'u8[491520]{0}', space=vmem, size = 0x78000, scoped, tag = 'input window, operand 1, single buffered']
    #allocation4 [shape = 's32[2]{0}', space=sflag, size = 0x8, scoped, tag = 'scoped memory for soft_erosion.1']
    %9 = vsyncpa [#allocation4], 0
    loop: start=0, step=1, limit=4
    $region2: #{soft_erosion.1} parent=1 // loop_pre_header
      _
    $region3: #{soft_erosion.1} parent=1 // loop_header
      %s11 = sphi 0, %s15
      %p12 = scmp.ge.s32.totalorder %s11, 4
      %s21 = sphi 0, %s23
      %s24 = sphi 0, %s21
      %s25 = sphi 0, %s24
      %s41 = sphi 0, %s25
      %s45 = sphi 0, %s45
      %s47 = sphi 0, %s45
      %s48 = sphi 0, %s47
      %s62 = sphi 0, %s48
      %s68 = sphi 0, %s70
      %s71 = sphi 0, %s68
      %s72 = sphi 0, %s71
      %s88 = sphi 0, %s72
      %s94 = sphi 0, %s96
      %s97 = sphi 0, %s94
      %s98 = sphi 0, %s97
      %s114 = sphi 0, %s98
    $region4: #{soft_erosion.1} parent=1 // loop_header_branch
      %14 = sbr.rel (%p12) target = $region8
    $region5: #{soft_erosion.1} parent=1 // loop_body
      %s16 = ssub.s32 %s11, 1
      %s17 = ssub.s32 %s11, 2
      %s18 = sadd.s32 %s11, 1
      %s19 = ssub.s32 %s11, %s18
      %p20 = scmp.eq.s32.totalorder %s19, 0
      %s22 = sadd.s32 %s21, 1
      %s23 = scalar_select %p20, %s21, %s22
      %p26 = pneg %p20
      %p27 = scmp.eq.s32.totalorder %s11, 1
      %p28 = por %p26, %p27
      %p29 = scmp.ne.s32.totalorder %s21, %s24
      %p30 = scmp.eq.s32.totalorder %s11, 0
      %p31 = por %p29, %p30
      %p32 = scmp.ne.s32.totalorder %s21, %s24
      %p33 = scmp.eq.s32.totalorder %s16, 1
      %p34 = por %p32, %p33
      %p35 = scmp.ne.s32.totalorder %s24, %s25
      %p36 = scmp.eq.s32.totalorder %s16, 0
      %p37 = por %p35, %p36
      %p38 = scmp.ne.s32.totalorder %s24, %s25
      %p39 = scmp.eq.s32.totalorder %s17, 1
      %p40 = por %p38, %p39
      %p42 = scmp.ne.s32.totalorder %s25, %s41
      %p43 = scmp.eq.s32.totalorder %s17, 0
      %p44 = por %p42, %p43
      %s46 = sadd.s32 %s45, 1
      %p49 = scmp.eq.s32.totalorder %s11, 1
      %p50 = scmp.ne.s32.totalorder %s45, %s47
      %p51 = scmp.eq.s32.totalorder %s11, 0
      %p52 = por %p50, %p51
      %p53 = scmp.ne.s32.totalorder %s45, %s47
      %p54 = scmp.eq.s32.totalorder %s16, 1
      %p55 = por %p53, %p54
      %p56 = scmp.ne.s32.totalorder %s47, %s48
      %p57 = scmp.eq.s32.totalorder %s16, 0
      %p58 = por %p56, %p57
      %p59 = scmp.ne.s32.totalorder %s47, %s48
      %p60 = scmp.eq.s32.totalorder %s17, 1
      %p61 = por %p59, %p60
      %p63 = scmp.ne.s32.totalorder %s48, %s62
      %p64 = scmp.eq.s32.totalorder %s17, 0
      %p65 = por %p63, %p64
      %s66 = ssub.s32 %s11, %s18
      %p67 = scmp.eq.s32.totalorder %s66, 0
      %s69 = sadd.s32 %s68, 1
      %s70 = scalar_select %p67, %s68, %s69
      %p73 = pneg %p67
      %p74 = scmp.eq.s32.totalorder %s11, 1
      %p75 = por %p73, %p74
      %p76 = scmp.ne.s32.totalorder %s68, %s71
      %p77 = scmp.eq.s32.totalorder %s11, 0
      %p78 = por %p76, %p77
      %p79 = scmp.ne.s32.totalorder %s68, %s71
      %p80 = scmp.eq.s32.totalorder %s16, 1
      %p81 = por %p79, %p80
      %p82 = scmp.ne.s32.totalorder %s71, %s72
      %p83 = scmp.eq.s32.totalorder %s16, 0
      %p84 = por %p82, %p83
      %p85 = scmp.ne.s32.totalorder %s71, %s72
      %p86 = scmp.eq.s32.totalorder %s17, 1
      %p87 = por %p85, %p86
      %p89 = scmp.ne.s32.totalorder %s72, %s88
      %p90 = scmp.eq.s32.totalorder %s17, 0
      %p91 = por %p89, %p90
      %s92 = ssub.s32 %s11, %s18
      %p93 = scmp.eq.s32.totalorder %s92, 0
      %s95 = sadd.s32 %s94, 1
      %s96 = scalar_select %p93, %s94, %s95
      %p99 = pneg %p93
      %p100 = scmp.eq.s32.totalorder %s11, 1
      %p101 = por %p99, %p100
      %p102 = scmp.ne.s32.totalorder %s94, %s97
      %p103 = scmp.eq.s32.totalorder %s11, 0
      %p104 = por %p102, %p103
      %p105 = scmp.ne.s32.totalorder %s94, %s97
      %p106 = scmp.eq.s32.totalorder %s16, 1
      %p107 = por %p105, %p106
      %p108 = scmp.ne.s32.totalorder %s97, %s98
      %p109 = scmp.eq.s32.totalorder %s16, 0
      %p110 = por %p108, %p109
      %p111 = scmp.ne.s32.totalorder %s97, %s98
      %p112 = scmp.eq.s32.totalorder %s17, 1
      %p113 = por %p111, %p112
      %p115 = scmp.ne.s32.totalorder %s98, %s114
      %p116 = scmp.eq.s32.totalorder %s17, 0
      %p117 = por %p115, %p116
      %p118 = scmp.le.s32.totalorder 1, %s11
      %p119 = scmp.lt.s32.totalorder %s11, 3
      %p120 = pnand %p118, %p119
      %p121 = pneg %p120
      // Predicated region
      $region9: #{soft_erosion.1} parent=5 // pred_check
        _
      $region10: #{soft_erosion.1} parent=5 // pred_check_branch
        %123 = sbr.rel (%p120) target = $region12
      $region11: #{soft_erosion.1} parent=5 // pred_region
        %s124 = ssub.s32 %s11, 1
        // Predicated region
        $region13: #{soft_erosion.1} parent=11 // pred_check
          %p125 = pneg %p58
        $region14: #{soft_erosion.1} parent=11 // pred_check_branch
          %127 = sbr.rel (%p125) target = $region16
        $region15: #{soft_erosion.1} parent=11 // pred_region
          %129 = vsyncadd [#allocation4], 0
          %s130 = sshll.u32 %s1, 4
          %s131 = int_to_ptr.hbm [resolvable:$true] %s130
          %s132 = sshll.u32 [#allocation3], 4
          %s133 = int_to_ptr.vmem [resolvable:$true] %s132
          %138 = dma.hbm_to_vmem [thread:$0]  %s131, 15360, %s133, [#allocation4], 64, 64, 4
        $region16: #{soft_erosion.1} parent=11 // pred_fallthru
          _
      $region12: #{soft_erosion.1} parent=5 // pred_fallthru
        _
      %p139 = scmp.lt.s32.totalorder %s11, 2
      // Predicated region
      $region17: #{soft_erosion.1} parent=5 // pred_check
        %p140 = pneg %p139
      $region18: #{soft_erosion.1} parent=5 // pred_check_branch
        %142 = sbr.rel (%p140) target = $region20
      $region19: #{soft_erosion.1} parent=5 // pred_region
        // Predicated region
        $region21: #{soft_erosion.1} parent=19 // pred_check
          %p143 = pneg %p31
        $region22: #{soft_erosion.1} parent=19 // pred_check_branch
          %145 = sbr.rel (%p143) target = $region24
        $region23: #{soft_erosion.1} parent=19 // pred_region
          %p146 = scmp.lt.s32.totalorder %s11, 1
          %s147 = scalar_select %p146, %s11, 1
          %s148 = smul.addr %s147, 16
          %s149 = smul.addr %s148, 4
          %s150 = scalar_lea.vmem %s0, %s149
        $region24: #{soft_erosion.1} parent=19 // pred_fallthru
          _
      $region20: #{soft_erosion.1} parent=5 // pred_fallthru
        _
      %p151 = scmp.le.s32.totalorder 1, %s11
      %p152 = scmp.lt.s32.totalorder %s11, 3
      %p153 = pnand %p151, %p152
      %p154 = pneg %p153
      // Predicated region
      $region25: #{soft_erosion.1} parent=5 // pred_check
        _
      $region26: #{soft_erosion.1} parent=5 // pred_check_branch
        %156 = sbr.rel (%p153) target = $region28
      $region27: #{soft_erosion.1} parent=5 // pred_region
        %s157 = ssub.s32 %s11, 1
        // Predicated region
        $region29: #{soft_erosion.1} parent=27 // pred_check
          %p158 = pneg %p58
        $region30: #{soft_erosion.1} parent=27 // pred_check_branch
          %160 = sbr.rel (%p158) target = $region32
        $region31: #{soft_erosion.1} parent=27 // pred_region
          %162 = dma.done [#allocation4], 15360
        $region32: #{soft_erosion.1} parent=27 // pred_fallthru
          _
        %p163 = scmp.lt.s32.totalorder %s16, 1
        %s164 = scalar_select %p163, %s16, 1
        %s165 = smul.addr %s164, 16
        %s166 = smul.addr %s165, 4
        %s167 = scalar_lea.vmem %s0, %s166
        %p168 = pneg %p37
        %p169 = pneg %p34
        %p170 = pneg %p58
        %p171 = pneg %p55
        %p172 = pneg %p84
        %p173 = pneg %p81
        %p174 = scmp.lt.s32.totalorder %s16, 1
        %s175 = scalar_select %p174, %s16, 1
        %s176 = smul.addr %s175, 16
        %s177 = smul.addr %s176, 8
        %s178 = scalar_lea.vmem %s2, %s177
        %p179 = pneg %p110
        %p180 = pneg %p107
        %p181 = scmp.lt.s32.totalorder %s16, 1
        %s182 = scalar_select %p181, %s16, 1
        %s183 = smul.addr %s182, 8
        %s184 = scalar_lea.vmem %s3, %s183
        %p185 = scmp.lt.s32.totalorder %s16, 1
        %s186 = scalar_select %p185, %s16, 1
        %s187 = smul.addr %s186, 16
        %s188 = smul.addr %s187, 4
        %s189 = scalar_lea.vmem %s0, %s188
        %p190 = scmp.lt.s32.totalorder %s16, 1
        %s191 = scalar_select %p190, %s16, 1
        %s192 = smul.addr %s191, 16
        %s193 = smul.addr %s192, 8
        %s194 = scalar_lea.vmem %s2, %s193
        %p195 = scmp.lt.s32.totalorder %s16, 1
        %s196 = scalar_select %p195, %s16, 1
        %s197 = smul.addr %s196, 8
        %s198 = scalar_lea.vmem %s3, %s197
        %200 = vst [vmem:[#allocation2] sm:$0xf] 0
        %201 = vst [vmem:[#allocation2 + $0x4] sm:$0xf] 0
        %202 = vst [vmem:[#allocation2 + $0x48] sm:$0xf] 0
        %203 = vst [vmem:[#allocation2 + $0x4c] sm:$0xf] 0
        %v204 = vld [vmem:[%s189] sm:$0xf]
        %v205 = vld [vmem:[%s189 + $0x4] sm:$0xf]
        %v206 = vld [vmem:[%s189 + $0x8] sm:$0xf]
        %v207 = vld [vmem:[%s189 + $0xc] sm:$0xf]
        %v208 = vld [vmem:[%s189 + $0x10] sm:$0xf]
        %v209 = vld [vmem:[%s189 + $0x14] sm:$0xf]
        %v210 = vld [vmem:[%s189 + $0x18] sm:$0xf]
        %v211 = vld [vmem:[%s189 + $0x1c] sm:$0xf]
        %v212 = vld [vmem:[%s189 + $0x20] sm:$0xf]
        %v213 = vld [vmem:[%s189 + $0x24] sm:$0xf]
        %v214 = vld [vmem:[%s189 + $0x28] sm:$0xf]
        %v215 = vld [vmem:[%s189 + $0x2c] sm:$0xf]
        %v216 = vld [vmem:[%s189 + $0x30] sm:$0xf]
        %v217 = vld [vmem:[%s189 + $0x34] sm:$0xf]
        %v218 = vld [vmem:[%s189 + $0x38] sm:$0xf]
        %v219 = vld [vmem:[%s189 + $0x3c] sm:$0xf]
        %220 = vst [vmem:[#allocation2 + $0x8] sm:$0xf] %v204
        %221 = vst [vmem:[#allocation2 + $0xc] sm:$0xf] %v205
        %222 = vst [vmem:[#allocation2 + $0x10] sm:$0xf] %v206
        %223 = vst [vmem:[#allocation2 + $0x14] sm:$0xf] %v207
        %224 = vst [vmem:[#allocation2 + $0x18] sm:$0xf] %v208
        %225 = vst [vmem:[#allocation2 + $0x1c] sm:$0xf] %v209
        %226 = vst [vmem:[#allocation2 + $0x20] sm:$0xf] %v210
        %227 = vst [vmem:[#allocation2 + $0x24] sm:$0xf] %v211
        %228 = vst [vmem:[#allocation2 + $0x28] sm:$0xf] %v212
        %229 = vst [vmem:[#allocation2 + $0x2c] sm:$0xf] %v213
        %230 = vst [vmem:[#allocation2 + $0x30] sm:$0xf] %v214
        %231 = vst [vmem:[#allocation2 + $0x34] sm:$0xf] %v215
        %232 = vst [vmem:[#allocation2 + $0x38] sm:$0xf] %v216
        %233 = vst [vmem:[#allocation2 + $0x3c] sm:$0xf] %v217
        %234 = vst [vmem:[#allocation2 + $0x40] sm:$0xf] %v218
        %235 = vst [vmem:[#allocation2 + $0x44] sm:$0xf] %v219
        %v236 = vld [vmem:[#allocation2 + $0x4] sm:$0xf]
        %v237 = vld [vmem:[#allocation2 + $0x8] sm:$0xf]
        %v238 = vld [vmem:[#allocation2 + $0xc] sm:$0xf]
        %v239 = vld [vmem:[#allocation2 + $0x10] sm:$0xf]
        %v240 = vld [vmem:[#allocation2 + $0x14] sm:$0xf]
        %v241 = vld [vmem:[#allocation2 + $0x18] sm:$0xf]
        %v242 = vld [vmem:[#allocation2 + $0x1c] sm:$0xf]
        %v243 = vld [vmem:[#allocation2 + $0x20] sm:$0xf]
        %v244 = vld [vmem:[#allocation2 + $0x24] sm:$0xf]
        %v245 = vld [vmem:[#allocation2 + $0x28] sm:$0xf]
        %v246 = vld [vmem:[#allocation2 + $0x2c] sm:$0xf]
        %v247 = vld [vmem:[#allocation2 + $0x30] sm:$0xf]
        %v248 = vld [vmem:[#allocation2 + $0x34] sm:$0xf]
        %v249 = vld [vmem:[#allocation2 + $0x38] sm:$0xf]
        %v250 = vld [vmem:[#allocation2 + $0x3c] sm:$0xf]
        %v251 = vld [vmem:[#allocation2 + $0x40] sm:$0xf]
        %v252 = vld [vmem:[#allocation2 + $0x44] sm:$0x1]
        %v253 = vld [vmem:[#allocation3] sm:$0xf]
        %v254 = vld [vmem:[#allocation3 + $0x4] sm:$0xf]
        %v255 = vld [vmem:[#allocation3 + $0x8] sm:$0xf]
        %v256 = vld [vmem:[#allocation3 + $0xc] sm:$0xf]
        %v257 = vld [vmem:[#allocation3 + $0x10] sm:$0xf]
        %v258 = vld [vmem:[#allocation3 + $0x14] sm:$0xf]
        %v259 = vld [vmem:[#allocation3 + $0x18] sm:$0xf]
        %v260 = vld [vmem:[#allocation3 + $0x1c] sm:$0xf]
        %v261 = vld [vmem:[#allocation3 + $0x20] sm:$0xf]
        %v262 = vld [vmem:[#allocation3 + $0x24] sm:$0xf]
        %v263 = vld [vmem:[#allocation3 + $0x28] sm:$0xf]
        %v264 = vld [vmem:[#allocation3 + $0x2c] sm:$0xf]
        %v265 = vld [vmem:[#allocation3 + $0x30] sm:$0xf]
        %v266 = vld [vmem:[#allocation3 + $0x34] sm:$0xf]
        %v267 = vld [vmem:[#allocation3 + $0x38] sm:$0xf]
        %v268 = vld [vmem:[#allocation3 + $0x3c] sm:$0xf]
        %v269 = vld [vmem:[#allocation2 + $0x4] sm:$0xe]
        %s270 = scalar_lea.vmem [#allocation3], 64
        %v271 = vld [vmem:[%s270] sm:$0xf]
        %v272 = vld [vmem:[%s270 + $0x4] sm:$0xf]
        %v273 = vld [vmem:[%s270 + $0x8] sm:$0xf]
        %v274 = vld [vmem:[%s270 + $0xc] sm:$0xf]
        %v275 = vld [vmem:[%s270 + $0x10] sm:$0xf]
        %v276 = vld [vmem:[%s270 + $0x14] sm:$0xf]
        %v277 = vld [vmem:[%s270 + $0x18] sm:$0xf]
        %v278 = vld [vmem:[%s270 + $0x1c] sm:$0xf]
        %v279 = vld [vmem:[%s270 + $0x20] sm:$0xf]
        %v280 = vld [vmem:[%s270 + $0x24] sm:$0xf]
        %v281 = vld [vmem:[%s270 + $0x28] sm:$0xf]
        %v282 = vld [vmem:[%s270 + $0x2c] sm:$0xf]
        %v283 = vld [vmem:[%s270 + $0x30] sm:$0xf]
        %v284 = vld [vmem:[%s270 + $0x34] sm:$0xf]
        %v285 = vld [vmem:[%s270 + $0x38] sm:$0xf]
        %v286 = vld [vmem:[%s270 + $0x3c] sm:$0xf]
        %v304 = vunpack.c.l.b16 %v269
        %v305 = vunpack.c.l.b16 %v237
        %v306 = vunpack.c.l.b16 %v238
        %v307 = vunpack.c.l.b16 %v239
        %v308 = vunpack.c.l.b16 %v240
        %v309 = vunpack.c.l.b16 %v241
        %v310 = vunpack.c.l.b16 %v242
        %v311 = vunpack.c.l.b16 %v243
        %v312 = vunpack.c.l.b16 %v244
        %v313 = vunpack.c.l.b16 %v245
        %v314 = vunpack.c.l.b16 %v246
        %v315 = vunpack.c.l.b16 %v247
        %v316 = vunpack.c.l.b16 %v248
        %v317 = vunpack.c.l.b16 %v249
        %v318 = vunpack.c.l.b16 %v250
        %v319 = vunpack.c.l.b16 %v251
        %v320 = vunpack.c.l.b16 %v252
        %v321 = vpack.c.b16 %v305, %v304
        %v322 = vpack.c.b16 %v307, %v306
        %v323 = vpack.c.b16 %v309, %v308
        %v324 = vpack.c.b16 %v311, %v310
        %v325 = vpack.c.b16 %v313, %v312
        %v326 = vpack.c.b16 %v315, %v314
        %v327 = vpack.c.b16 %v317, %v316
        %v328 = vpack.c.b16 %v319, %v318
        %v329 = vpack.c.b16 %v320, %v320
        %vm330 = vcmask 1046528
        %v331 = vrot.slane %v321, 1
        %v332 = vrot.slane %v322, 1
        %v333 = vsel %vm330, %v331, %v332
        %v334 = vrot.slane %v323, 1
        %v335 = vsel %vm330, %v332, %v334
        %v336 = vrot.slane %v324, 1
        %v337 = vsel %vm330, %v334, %v336
        %v338 = vrot.slane %v325, 1
        %v339 = vsel %vm330, %v336, %v338
        %v340 = vrot.slane %v326, 1
        %v341 = vsel %vm330, %v338, %v340
        %v342 = vrot.slane %v327, 1
        %v343 = vsel %vm330, %v340, %v342
        %v344 = vrot.slane %v328, 1
        %v345 = vsel %vm330, %v342, %v344
        %v346 = vrot.slane %v329, 1
        %v347 = vsel %vm330, %v344, %v346
        %v372 = vunpack.c.l.b16 %v271
        %v373 = vunpack.c.l.b16 %v272
        %v374 = vunpack.c.l.b16 %v273
        %v375 = vunpack.c.l.b16 %v274
        %v376 = vunpack.c.l.b16 %v275
        %v377 = vunpack.c.l.b16 %v276
        %v378 = vunpack.c.l.b16 %v277
        %v379 = vunpack.c.l.b16 %v278
        %v380 = vunpack.c.l.b16 %v279
        %v381 = vunpack.c.l.b16 %v280
        %v382 = vunpack.c.l.b16 %v281
        %v383 = vunpack.c.l.b16 %v282
        %v384 = vunpack.c.l.b16 %v283
        %v385 = vunpack.c.l.b16 %v284
        %v386 = vunpack.c.l.b16 %v285
        %v387 = vunpack.c.l.b16 %v286
        %v388 = vpack.c.b16 %v373, %v372
        %v389 = vpack.c.b16 %v375, %v374
        %v390 = vpack.c.b16 %v377, %v376
        %v391 = vpack.c.b16 %v379, %v378
        %v392 = vpack.c.b16 %v381, %v380
        %v393 = vpack.c.b16 %v383, %v382
        %v394 = vpack.c.b16 %v385, %v384
        %v395 = vpack.c.b16 %v387, %v386
        %404 = vmatpush.bf16.msra.mxu0 %v395
        %405 = vmatpush.bf16.msra.mxu0 %v394
        %406 = vmatpush.bf16.msra.mxu0 %v393
        %407 = vmatpush.bf16.msra.mxu0 %v392
        %408 = vmatpush.bf16.msra.mxu0 %v391
        %409 = vmatpush.bf16.msra.mxu0 %v390
        %410 = vmatpush.bf16.msra.mxu0 %v389
        %411 = vmatpush.bf16.msra.mxu0 %v388
        %412 = vmatmul.bf16.gmra.mxu0 %v333
        %v413 = vpop.f32.mrf.mxu0
        %v414 = vadd.f32 0.0, %v413
        %v415 = vpop.f32.mrf.mxu0
        %v416 = vadd.f32 0.0, %v415
        %417 = vmatmul.bf16.gmra.mxu0 %v335
        %v418 = vpop.f32.mrf.mxu0
        %v419 = vadd.f32 0.0, %v418
        %v420 = vpop.f32.mrf.mxu0
        %v421 = vadd.f32 0.0, %v420
        %422 = vmatmul.bf16.gmra.mxu0 %v337
        %v423 = vpop.f32.mrf.mxu0
        %v424 = vadd.f32 0.0, %v423
        %v425 = vpop.f32.mrf.mxu0
        %v426 = vadd.f32 0.0, %v425
        %427 = vmatmul.bf16.gmra.mxu0 %v339
        %v428 = vpop.f32.mrf.mxu0
        %v429 = vadd.f32 0.0, %v428
        %v430 = vpop.f32.mrf.mxu0
        %v431 = vadd.f32 0.0, %v430
        %432 = vmatmul.bf16.gmra.mxu0 %v341
        %v433 = vpop.f32.mrf.mxu0
        %v434 = vadd.f32 0.0, %v433
        %v435 = vpop.f32.mrf.mxu0
        %v436 = vadd.f32 0.0, %v435
        %437 = vmatmul.bf16.gmra.mxu0 %v343
        %v438 = vpop.f32.mrf.mxu0
        %v439 = vadd.f32 0.0, %v438
        %v440 = vpop.f32.mrf.mxu0
        %v441 = vadd.f32 0.0, %v440
        %442 = vmatmul.bf16.gmra.mxu0 %v345
        %v443 = vpop.f32.mrf.mxu0
        %v444 = vadd.f32 0.0, %v443
        %v445 = vpop.f32.mrf.mxu0
        %v446 = vadd.f32 0.0, %v445
        %447 = vmatmul.bf16.gmra.mxu0 %v347
        %v448 = vpop.f32.mrf.mxu0
        %v449 = vadd.f32 0.0, %v448
        %v450 = vpop.f32.mrf.mxu0
        %v451 = vadd.f32 0.0, %v450
        %452 = vdwg.mxu0
        %v454 = vunpack.c.l.b16 %v236
        %v455 = vpack.c.b16 %v305, %v454
        %vm456 = vsmask.f32 7424
        %v458 = vshrl.u32 %v455, 16
        %v460 = vshll.u32 %v455, 16
        %v462 = vrot.slane %v460, 1
        %v463 = vor.u32 %v458, %v462
        %v465 = vshll.u32 %v322, 16
        %v467 = vrot.slane %v465, 1
        %v468 = vsel %vm456, %v463, %v467
        %v469 = vshrl.u32 %v322, 16
        %v471 = vor.u32 %v469, %v467
        %v473 = vshll.u32 %v323, 16
        %v475 = vrot.slane %v473, 1
        %v476 = vsel %vm456, %v471, %v475
        %v477 = vshrl.u32 %v323, 16
        %v479 = vor.u32 %v477, %v475
        %v481 = vshll.u32 %v324, 16
        %v483 = vrot.slane %v481, 1
        %v484 = vsel %vm456, %v479, %v483
        %v485 = vshrl.u32 %v324, 16
        %v487 = vor.u32 %v485, %v483
        %v489 = vshll.u32 %v325, 16
        %v491 = vrot.slane %v489, 1
        %v492 = vsel %vm456, %v487, %v491
        %v493 = vshrl.u32 %v325, 16
        %v495 = vor.u32 %v493, %v491
        %v497 = vshll.u32 %v326, 16
        %v499 = vrot.slane %v497, 1
        %v500 = vsel %vm456, %v495, %v499
        %v501 = vshrl.u32 %v326, 16
        %v503 = vor.u32 %v501, %v499
        %v505 = vshll.u32 %v327, 16
        %v507 = vrot.slane %v505, 1
        %v508 = vsel %vm456, %v503, %v507
        %v509 = vshrl.u32 %v327, 16
        %v511 = vor.u32 %v509, %v507
        %v513 = vshll.u32 %v328, 16
        %v515 = vrot.slane %v513, 1
        %v516 = vsel %vm456, %v511, %v515
        %v517 = vshrl.u32 %v328, 16
        %v519 = vor.u32 %v517, %v515
        %v521 = vshll.u32 %v329, 16
        %v523 = vrot.slane %v521, 1
        %v524 = vsel %vm456, %v519, %v523
        %v549 = vunpack.c.l.b16 %v253
        %v550 = vunpack.c.l.b16 %v254
        %v551 = vunpack.c.l.b16 %v255
        %v552 = vunpack.c.l.b16 %v256
        %v553 = vunpack.c.l.b16 %v257
        %v554 = vunpack.c.l.b16 %v258
        %v555 = vunpack.c.l.b16 %v259
        %v556 = vunpack.c.l.b16 %v260
        %v557 = vunpack.c.l.b16 %v261
        %v558 = vunpack.c.l.b16 %v262
        %v559 = vunpack.c.l.b16 %v263
        %v560 = vunpack.c.l.b16 %v264
        %v561 = vunpack.c.l.b16 %v265
        %v562 = vunpack.c.l.b16 %v266
        %v563 = vunpack.c.l.b16 %v267
        %v564 = vunpack.c.l.b16 %v268
        %v565 = vpack.c.b16 %v550, %v549
        %v566 = vpack.c.b16 %v552, %v551
        %v567 = vpack.c.b16 %v554, %v553
        %v568 = vpack.c.b16 %v556, %v555
        %v569 = vpack.c.b16 %v558, %v557
        %v570 = vpack.c.b16 %v560, %v559
        %v571 = vpack.c.b16 %v562, %v561
        %v572 = vpack.c.b16 %v564, %v563
        %581 = vmatpush.bf16.msra.mxu0 %v572
        %582 = vmatpush.bf16.msra.mxu0 %v571
        %583 = vmatpush.bf16.msra.mxu0 %v570
        %584 = vmatpush.bf16.msra.mxu0 %v569
        %585 = vmatpush.bf16.msra.mxu0 %v568
        %586 = vmatpush.bf16.msra.mxu0 %v567
        %587 = vmatpush.bf16.msra.mxu0 %v566
        %588 = vmatpush.bf16.msra.mxu0 %v565
        %589 = vmatmul.bf16.gmra.mxu0 %v468
        %v590 = vpop.f32.mrf.mxu0
        %v591 = vadd.f32 %v414, %v590
        %v592 = vpop.f32.mrf.mxu0
        %v593 = vadd.f32 %v416, %v592
        %594 = vmatmul.bf16.gmra.mxu0 %v476
        %v595 = vpop.f32.mrf.mxu0
        %v596 = vadd.f32 %v419, %v595
        %v597 = vpop.f32.mrf.mxu0
        %v598 = vadd.f32 %v421, %v597
        %599 = vmatmul.bf16.gmra.mxu0 %v484
        %v600 = vpop.f32.mrf.mxu0
        %v601 = vadd.f32 %v424, %v600
        %v602 = vpop.f32.mrf.mxu0
        %v603 = vadd.f32 %v426, %v602
        %604 = vmatmul.bf16.gmra.mxu0 %v492
        %v605 = vpop.f32.mrf.mxu0
        %v606 = vadd.f32 %v429, %v605
        %v607 = vpop.f32.mrf.mxu0
        %v608 = vadd.f32 %v431, %v607
        %609 = vmatmul.bf16.gmra.mxu0 %v500
        %v610 = vpop.f32.mrf.mxu0
        %v611 = vadd.f32 %v434, %v610
        %v612 = vpop.f32.mrf.mxu0
        %v613 = vadd.f32 %v436, %v612
        %614 = vmatmul.bf16.gmra.mxu0 %v508
        %v615 = vpop.f32.mrf.mxu0
        %v616 = vadd.f32 %v439, %v615
        %v617 = vpop.f32.mrf.mxu0
        %v618 = vadd.f32 %v441, %v617
        %619 = vmatmul.bf16.gmra.mxu0 %v516
        %v620 = vpop.f32.mrf.mxu0
        %v621 = vadd.f32 %v444, %v620
        %v622 = vpop.f32.mrf.mxu0
        %v623 = vadd.f32 %v446, %v622
        %624 = vmatmul.bf16.gmra.mxu0 %v524
        %v625 = vpop.f32.mrf.mxu0
        %v626 = vadd.f32 %v449, %v625
        %v627 = vpop.f32.mrf.mxu0
        %v628 = vadd.f32 %v451, %v627
        %629 = vdwg.mxu0
        %v630 = vld [vmem:[#allocation2 + $0x44] sm:$0x3]
        %s631 = scalar_lea.vmem [#allocation3], 128
        %v632 = vld [vmem:[%s631] sm:$0xf]
        %v633 = vld [vmem:[%s631 + $0x4] sm:$0xf]
        %v634 = vld [vmem:[%s631 + $0x8] sm:$0xf]
        %v635 = vld [vmem:[%s631 + $0xc] sm:$0xf]
        %v636 = vld [vmem:[%s631 + $0x10] sm:$0xf]
        %v637 = vld [vmem:[%s631 + $0x14] sm:$0xf]
        %v638 = vld [vmem:[%s631 + $0x18] sm:$0xf]
        %v639 = vld [vmem:[%s631 + $0x1c] sm:$0xf]
        %v640 = vld [vmem:[%s631 + $0x20] sm:$0xf]
        %v641 = vld [vmem:[%s631 + $0x24] sm:$0xf]
        %v642 = vld [vmem:[%s631 + $0x28] sm:$0xf]
        %v643 = vld [vmem:[%s631 + $0x2c] sm:$0xf]
        %v644 = vld [vmem:[%s631 + $0x30] sm:$0xf]
        %v645 = vld [vmem:[%s631 + $0x34] sm:$0xf]
        %v646 = vld [vmem:[%s631 + $0x38] sm:$0xf]
        %v647 = vld [vmem:[%s631 + $0x3c] sm:$0xf]
        %v649 = vunpack.c.l.b16 %v630
        %v650 = vpack.c.b16 %v649, %v649
        %vm651 = vsmask.f32 6400
        %v653 = vshrl.u32 %v321, 16
        %v655 = vrot.slane %v653, 1
        %v656 = vshll.u32 %v321, 16
        %v658 = vrot.slane %v656, 2
        %v659 = vor.u32 %v655, %v658
        %v660 = vrot.slane %v469, 1
        %v661 = vrot.slane %v465, 2
        %v662 = vor.u32 %v660, %v661
        %v663 = vsel %vm651, %v659, %v662
        %v664 = vrot.slane %v477, 1
        %v665 = vrot.slane %v473, 2
        %v666 = vor.u32 %v664, %v665
        %v667 = vsel %vm651, %v662, %v666
        %v668 = vrot.slane %v485, 1
        %v669 = vrot.slane %v481, 2
        %v670 = vor.u32 %v668, %v669
        %v671 = vsel %vm651, %v666, %v670
        %v672 = vrot.slane %v493, 1
        %v673 = vrot.slane %v489, 2
        %v674 = vor.u32 %v672, %v673
        %v675 = vsel %vm651, %v670, %v674
        %v676 = vrot.slane %v501, 1
        %v677 = vrot.slane %v497, 2
        %v678 = vor.u32 %v676, %v677
        %v679 = vsel %vm651, %v674, %v678
        %v680 = vrot.slane %v509, 1
        %v681 = vrot.slane %v505, 2
        %v682 = vor.u32 %v680, %v681
        %v683 = vsel %vm651, %v678, %v682
        %v684 = vrot.slane %v517, 1
        %v685 = vrot.slane %v513, 2
        %v686 = vor.u32 %v684, %v685
        %v687 = vsel %vm651, %v682, %v686
        %v689 = vshrl.u32 %v650, 16
        %v691 = vrot.slane %v689, 1
        %v692 = vshll.u32 %v650, 16
        %v694 = vrot.slane %v692, 2
        %v695 = vor.u32 %v691, %v694
        %v696 = vsel %vm651, %v686, %v695
        %v721 = vunpack.c.l.b16 %v632
        %v722 = vunpack.c.l.b16 %v633
        %v723 = vunpack.c.l.b16 %v634
        %v724 = vunpack.c.l.b16 %v635
        %v725 = vunpack.c.l.b16 %v636
        %v726 = vunpack.c.l.b16 %v637
        %v727 = vunpack.c.l.b16 %v638
        %v728 = vunpack.c.l.b16 %v639
        %v729 = vunpack.c.l.b16 %v640
        %v730 = vunpack.c.l.b16 %v641
        %v731 = vunpack.c.l.b16 %v642
        %v732 = vunpack.c.l.b16 %v643
        %v733 = vunpack.c.l.b16 %v644
        %v734 = vunpack.c.l.b16 %v645
        %v735 = vunpack.c.l.b16 %v646
        %v736 = vunpack.c.l.b16 %v647
        %v737 = vpack.c.b16 %v722, %v721
        %v738 = vpack.c.b16 %v724, %v723
        %v739 = vpack.c.b16 %v726, %v725
        %v740 = vpack.c.b16 %v728, %v727
        %v741 = vpack.c.b16 %v730, %v729
        %v742 = vpack.c.b16 %v732, %v731
        %v743 = vpack.c.b16 %v734, %v733
        %v744 = vpack.c.b16 %v736, %v735
        %753 = vmatpush.bf16.msra.mxu0 %v744
        %754 = vmatpush.bf16.msra.mxu0 %v743
        %755 = vmatpush.bf16.msra.mxu0 %v742
        %756 = vmatpush.bf16.msra.mxu0 %v741
        %757 = vmatpush.bf16.msra.mxu0 %v740
        %758 = vmatpush.bf16.msra.mxu0 %v739
        %759 = vmatpush.bf16.msra.mxu0 %v738
        %760 = vmatpush.bf16.msra.mxu0 %v737
        %761 = vmatmul.bf16.gmra.mxu0 %v663
        %v762 = vpop.f32.mrf.mxu0
        %v763 = vadd.f32 0.0, %v762
        %v764 = vpop.f32.mrf.mxu0
        %v765 = vadd.f32 0.0, %v764
        %766 = vmatmul.bf16.gmra.mxu0 %v667
        %v767 = vpop.f32.mrf.mxu0
        %v768 = vadd.f32 0.0, %v767
        %v769 = vpop.f32.mrf.mxu0
        %v770 = vadd.f32 0.0, %v769
        %771 = vmatmul.bf16.gmra.mxu0 %v671
        %v772 = vpop.f32.mrf.mxu0
        %v773 = vadd.f32 0.0, %v772
        %v774 = vpop.f32.mrf.mxu0
        %v775 = vadd.f32 0.0, %v774
        %776 = vmatmul.bf16.gmra.mxu0 %v675
        %v777 = vpop.f32.mrf.mxu0
        %v778 = vadd.f32 0.0, %v777
        %v779 = vpop.f32.mrf.mxu0
        %v780 = vadd.f32 0.0, %v779
        %781 = vmatmul.bf16.gmra.mxu0 %v679
        %v782 = vpop.f32.mrf.mxu0
        %v783 = vadd.f32 0.0, %v782
        %v784 = vpop.f32.mrf.mxu0
        %v785 = vadd.f32 0.0, %v784
        %786 = vmatmul.bf16.gmra.mxu0 %v683
        %v787 = vpop.f32.mrf.mxu0
        %v788 = vadd.f32 0.0, %v787
        %v789 = vpop.f32.mrf.mxu0
        %v790 = vadd.f32 0.0, %v789
        %791 = vmatmul.bf16.gmra.mxu0 %v687
        %v792 = vpop.f32.mrf.mxu0
        %v793 = vadd.f32 0.0, %v792
        %v794 = vpop.f32.mrf.mxu0
        %v795 = vadd.f32 0.0, %v794
        %796 = vmatmul.bf16.gmra.mxu0 %v696
        %v797 = vpop.f32.mrf.mxu0
        %v798 = vadd.f32 0.0, %v797
        %v799 = vpop.f32.mrf.mxu0
        %v800 = vadd.f32 0.0, %v799
        %801 = vdwg.mxu0
        %v802 = vadd.f32 %v591, %v763
        %v803 = vadd.f32 %v593, %v765
        %v804 = vadd.f32 %v596, %v768
        %v805 = vadd.f32 %v598, %v770
        %v806 = vadd.f32 %v601, %v773
        %v807 = vadd.f32 %v603, %v775
        %v808 = vadd.f32 %v606, %v778
        %v809 = vadd.f32 %v608, %v780
        %v810 = vadd.f32 %v611, %v783
        %v811 = vadd.f32 %v613, %v785
        %v812 = vadd.f32 %v616, %v788
        %v813 = vadd.f32 %v618, %v790
        %v814 = vadd.f32 %v621, %v793
        %v815 = vadd.f32 %v623, %v795
        %v816 = vadd.f32 %v626, %v798
        %v817 = vadd.f32 %v628, %v800
        %v818 = vld [vmem:[#allocation2 + $0x4] sm:$0xc]
        %s819 = scalar_lea.vmem [#allocation3], 192
        %v820 = vld [vmem:[%s819] sm:$0xf]
        %v821 = vld [vmem:[%s819 + $0x4] sm:$0xf]
        %v822 = vld [vmem:[%s819 + $0x8] sm:$0xf]
        %v823 = vld [vmem:[%s819 + $0xc] sm:$0xf]
        %v824 = vld [vmem:[%s819 + $0x10] sm:$0xf]
        %v825 = vld [vmem:[%s819 + $0x14] sm:$0xf]
        %v826 = vld [vmem:[%s819 + $0x18] sm:$0xf]
        %v827 = vld [vmem:[%s819 + $0x1c] sm:$0xf]
        %v828 = vld [vmem:[%s819 + $0x20] sm:$0xf]
        %v829 = vld [vmem:[%s819 + $0x24] sm:$0xf]
        %v830 = vld [vmem:[%s819 + $0x28] sm:$0xf]
        %v831 = vld [vmem:[%s819 + $0x2c] sm:$0xf]
        %v832 = vld [vmem:[%s819 + $0x30] sm:$0xf]
        %v833 = vld [vmem:[%s819 + $0x34] sm:$0xf]
        %v834 = vld [vmem:[%s819 + $0x38] sm:$0xf]
        %v835 = vld [vmem:[%s819 + $0x3c] sm:$0xf]
        %v837 = vunpack.c.l.b16 %v818
        %v838 = vpack.c.b16 %v305, %v837
        %vm839 = vcmask 1045504
        %v840 = vrot.slane %v838, 2
        %v841 = vrot.slane %v322, 2
        %v842 = vsel %vm839, %v840, %v841
        %v843 = vrot.slane %v323, 2
        %v844 = vsel %vm839, %v841, %v843
        %v845 = vrot.slane %v324, 2
        %v846 = vsel %vm839, %v843, %v845
        %v847 = vrot.slane %v325, 2
        %v848 = vsel %vm839, %v845, %v847
        %v849 = vrot.slane %v326, 2
        %v850 = vsel %vm839, %v847, %v849
        %v851 = vrot.slane %v327, 2
        %v852 = vsel %vm839, %v849, %v851
        %v853 = vrot.slane %v328, 2
        %v854 = vsel %vm839, %v851, %v853
        %v855 = vrot.slane %v650, 2
        %v856 = vsel %vm839, %v853, %v855
        %v881 = vunpack.c.l.b16 %v820
        %v882 = vunpack.c.l.b16 %v821
        %v883 = vunpack.c.l.b16 %v822
        %v884 = vunpack.c.l.b16 %v823
        %v885 = vunpack.c.l.b16 %v824
        %v886 = vunpack.c.l.b16 %v825
        %v887 = vunpack.c.l.b16 %v826
        %v888 = vunpack.c.l.b16 %v827
        %v889 = vunpack.c.l.b16 %v828
        %v890 = vunpack.c.l.b16 %v829
        %v891 = vunpack.c.l.b16 %v830
        %v892 = vunpack.c.l.b16 %v831
        %v893 = vunpack.c.l.b16 %v832
        %v894 = vunpack.c.l.b16 %v833
        %v895 = vunpack.c.l.b16 %v834
        %v896 = vunpack.c.l.b16 %v835
        %v897 = vpack.c.b16 %v882, %v881
        %v898 = vpack.c.b16 %v884, %v883
        %v899 = vpack.c.b16 %v886, %v885
        %v900 = vpack.c.b16 %v888, %v887
        %v901 = vpack.c.b16 %v890, %v889
        %v902 = vpack.c.b16 %v892, %v891
        %v903 = vpack.c.b16 %v894, %v893
        %v904 = vpack.c.b16 %v896, %v895
        %913 = vmatpush.bf16.msra.mxu0 %v904
        %914 = vmatpush.bf16.msra.mxu0 %v903
        %915 = vmatpush.bf16.msra.mxu0 %v902
        %916 = vmatpush.bf16.msra.mxu0 %v901
        %917 = vmatpush.bf16.msra.mxu0 %v900
        %918 = vmatpush.bf16.msra.mxu0 %v899
        %919 = vmatpush.bf16.msra.mxu0 %v898
        %920 = vmatpush.bf16.msra.mxu0 %v897
        %921 = vmatmul.bf16.gmra.mxu0 %v842
        %v922 = vpop.f32.mrf.mxu0
        %v923 = vadd.f32 0.0, %v922
        %v924 = vpop.f32.mrf.mxu0
        %v925 = vadd.f32 0.0, %v924
        %926 = vmatmul.bf16.gmra.mxu0 %v844
        %v927 = vpop.f32.mrf.mxu0
        %v928 = vadd.f32 0.0, %v927
        %v929 = vpop.f32.mrf.mxu0
        %v930 = vadd.f32 0.0, %v929
        %931 = vmatmul.bf16.gmra.mxu0 %v846
        %v932 = vpop.f32.mrf.mxu0
        %v933 = vadd.f32 0.0, %v932
        %v934 = vpop.f32.mrf.mxu0
        %v935 = vadd.f32 0.0, %v934
        %936 = vmatmul.bf16.gmra.mxu0 %v848
        %v937 = vpop.f32.mrf.mxu0
        %v938 = vadd.f32 0.0, %v937
        %v939 = vpop.f32.mrf.mxu0
        %v940 = vadd.f32 0.0, %v939
        %941 = vmatmul.bf16.gmra.mxu0 %v850
        %v942 = vpop.f32.mrf.mxu0
        %v943 = vadd.f32 0.0, %v942
        %v944 = vpop.f32.mrf.mxu0
        %v945 = vadd.f32 0.0, %v944
        %946 = vmatmul.bf16.gmra.mxu0 %v852
        %v947 = vpop.f32.mrf.mxu0
        %v948 = vadd.f32 0.0, %v947
        %v949 = vpop.f32.mrf.mxu0
        %v950 = vadd.f32 0.0, %v949
        %951 = vmatmul.bf16.gmra.mxu0 %v854
        %v952 = vpop.f32.mrf.mxu0
        %v953 = vadd.f32 0.0, %v952
        %v954 = vpop.f32.mrf.mxu0
        %v955 = vadd.f32 0.0, %v954
        %956 = vmatmul.bf16.gmra.mxu0 %v856
        %v957 = vpop.f32.mrf.mxu0
        %v958 = vadd.f32 0.0, %v957
        %v959 = vpop.f32.mrf.mxu0
        %v960 = vadd.f32 0.0, %v959
        %961 = vdwg.mxu0
        %v962 = vadd.f32 %v802, %v923
        %v963 = vadd.f32 %v803, %v925
        %v964 = vadd.f32 %v804, %v928
        %v965 = vadd.f32 %v805, %v930
        %v966 = vadd.f32 %v806, %v933
        %v967 = vadd.f32 %v807, %v935
        %v968 = vadd.f32 %v808, %v938
        %v969 = vadd.f32 %v809, %v940
        %v970 = vadd.f32 %v810, %v943
        %v971 = vadd.f32 %v811, %v945
        %v972 = vadd.f32 %v812, %v948
        %v973 = vadd.f32 %v813, %v950
        %v974 = vadd.f32 %v814, %v953
        %v975 = vadd.f32 %v815, %v955
        %v976 = vadd.f32 %v816, %v958
        %v977 = vadd.f32 %v817, %v960
        %v978 = vld [vmem:[#allocation2 + $0x44] sm:$0x7]
        %s979 = scalar_lea.vmem [#allocation3], 256
        %v980 = vld [vmem:[%s979] sm:$0xf]
        %v981 = vld [vmem:[%s979 + $0x4] sm:$0xf]
        %v982 = vld [vmem:[%s979 + $0x8] sm:$0xf]
        %v983 = vld [vmem:[%s979 + $0xc] sm:$0xf]
        %v984 = vld [vmem:[%s979 + $0x10] sm:$0xf]
        %v985 = vld [vmem:[%s979 + $0x14] sm:$0xf]
        %v986 = vld [vmem:[%s979 + $0x18] sm:$0xf]
        %v987 = vld [vmem:[%s979 + $0x1c] sm:$0xf]
        %v988 = vld [vmem:[%s979 + $0x20] sm:$0xf]
        %v989 = vld [vmem:[%s979 + $0x24] sm:$0xf]
        %v990 = vld [vmem:[%s979 + $0x28] sm:$0xf]
        %v991 = vld [vmem:[%s979 + $0x2c] sm:$0xf]
        %v992 = vld [vmem:[%s979 + $0x30] sm:$0xf]
        %v993 = vld [vmem:[%s979 + $0x34] sm:$0xf]
        %v994 = vld [vmem:[%s979 + $0x38] sm:$0xf]
        %v995 = vld [vmem:[%s979 + $0x3c] sm:$0xf]
        %v997 = vunpack.c.l.b16 %v978
        %v998 = vpack.c.b16 %v997, %v997
        %vm999 = vsmask.f32 5376
        %v1001 = vshrl.u32 %v838, 16
        %v1003 = vrot.slane %v1001, 2
        %v1004 = vshll.u32 %v838, 16
        %v1006 = vrot.slane %v1004, 3
        %v1007 = vor.u32 %v1003, %v1006
        %v1008 = vrot.slane %v469, 2
        %v1009 = vrot.slane %v465, 3
        %v1010 = vor.u32 %v1008, %v1009
        %v1011 = vsel %vm999, %v1007, %v1010
        %v1012 = vrot.slane %v477, 2
        %v1013 = vrot.slane %v473, 3
        %v1014 = vor.u32 %v1012, %v1013
        %v1015 = vsel %vm999, %v1010, %v1014
        %v1016 = vrot.slane %v485, 2
        %v1017 = vrot.slane %v481, 3
        %v1018 = vor.u32 %v1016, %v1017
        %v1019 = vsel %vm999, %v1014, %v1018
        %v1020 = vrot.slane %v493, 2
        %v1021 = vrot.slane %v489, 3
        %v1022 = vor.u32 %v1020, %v1021
        %v1023 = vsel %vm999, %v1018, %v1022
        %v1024 = vrot.slane %v501, 2
        %v1025 = vrot.slane %v497, 3
        %v1026 = vor.u32 %v1024, %v1025
        %v1027 = vsel %vm999, %v1022, %v1026
        %v1028 = vrot.slane %v509, 2
        %v1029 = vrot.slane %v505, 3
        %v1030 = vor.u32 %v1028, %v1029
        %v1031 = vsel %vm999, %v1026, %v1030
        %v1032 = vrot.slane %v517, 2
        %v1033 = vrot.slane %v513, 3
        %v1034 = vor.u32 %v1032, %v1033
        %v1035 = vsel %vm999, %v1030, %v1034
        %v1037 = vshrl.u32 %v998, 16
        %v1039 = vrot.slane %v1037, 2
        %v1040 = vshll.u32 %v998, 16
        %v1042 = vrot.slane %v1040, 3
        %v1043 = vor.u32 %v1039, %v1042
        %v1044 = vsel %vm999, %v1034, %v1043
        %v1069 = vunpack.c.l.b16 %v980
        %v1070 = vunpack.c.l.b16 %v981
        %v1071 = vunpack.c.l.b16 %v982
        %v1072 = vunpack.c.l.b16 %v983
        %v1073 = vunpack.c.l.b16 %v984
        %v1074 = vunpack.c.l.b16 %v985
        %v1075 = vunpack.c.l.b16 %v986
        %v1076 = vunpack.c.l.b16 %v987
        %v1077 = vunpack.c.l.b16 %v988
        %v1078 = vunpack.c.l.b16 %v989
        %v1079 = vunpack.c.l.b16 %v990
        %v1080 = vunpack.c.l.b16 %v991
        %v1081 = vunpack.c.l.b16 %v992
        %v1082 = vunpack.c.l.b16 %v993
        %v1083 = vunpack.c.l.b16 %v994
        %v1084 = vunpack.c.l.b16 %v995
        %v1085 = vpack.c.b16 %v1070, %v1069
        %v1086 = vpack.c.b16 %v1072, %v1071
        %v1087 = vpack.c.b16 %v1074, %v1073
        %v1088 = vpack.c.b16 %v1076, %v1075
        %v1089 = vpack.c.b16 %v1078, %v1077
        %v1090 = vpack.c.b16 %v1080, %v1079
        %v1091 = vpack.c.b16 %v1082, %v1081
        %v1092 = vpack.c.b16 %v1084, %v1083
        %1101 = vmatpush.bf16.msra.mxu0 %v1092
        %1102 = vmatpush.bf16.msra.mxu0 %v1091
        %1103 = vmatpush.bf16.msra.mxu0 %v1090
        %1104 = vmatpush.bf16.msra.mxu0 %v1089
        %1105 = vmatpush.bf16.msra.mxu0 %v1088
        %1106 = vmatpush.bf16.msra.mxu0 %v1087
        %1107 = vmatpush.bf16.msra.mxu0 %v1086
        %1108 = vmatpush.bf16.msra.mxu0 %v1085
        %1109 = vmatmul.bf16.gmra.mxu0 %v1011
        %v1110 = vpop.f32.mrf.mxu0
        %v1111 = vadd.f32 0.0, %v1110
        %v1112 = vpop.f32.mrf.mxu0
        %v1113 = vadd.f32 0.0, %v1112
        %1114 = vmatmul.bf16.gmra.mxu0 %v1015
        %v1115 = vpop.f32.mrf.mxu0
        %v1116 = vadd.f32 0.0, %v1115
        %v1117 = vpop.f32.mrf.mxu0
        %v1118 = vadd.f32 0.0, %v1117
        %1119 = vmatmul.bf16.gmra.mxu0 %v1019
        %v1120 = vpop.f32.mrf.mxu0
        %v1121 = vadd.f32 0.0, %v1120
        %v1122 = vpop.f32.mrf.mxu0
        %v1123 = vadd.f32 0.0, %v1122
        %1124 = vmatmul.bf16.gmra.mxu0 %v1023
        %v1125 = vpop.f32.mrf.mxu0
        %v1126 = vadd.f32 0.0, %v1125
        %v1127 = vpop.f32.mrf.mxu0
        %v1128 = vadd.f32 0.0, %v1127
        %1129 = vmatmul.bf16.gmra.mxu0 %v1027
        %v1130 = vpop.f32.mrf.mxu0
        %v1131 = vadd.f32 0.0, %v1130
        %v1132 = vpop.f32.mrf.mxu0
        %v1133 = vadd.f32 0.0, %v1132
        %1134 = vmatmul.bf16.gmra.mxu0 %v1031
        %v1135 = vpop.f32.mrf.mxu0
        %v1136 = vadd.f32 0.0, %v1135
        %v1137 = vpop.f32.mrf.mxu0
        %v1138 = vadd.f32 0.0, %v1137
        %1139 = vmatmul.bf16.gmra.mxu0 %v1035
        %v1140 = vpop.f32.mrf.mxu0
        %v1141 = vadd.f32 0.0, %v1140
        %v1142 = vpop.f32.mrf.mxu0
        %v1143 = vadd.f32 0.0, %v1142
        %1144 = vmatmul.bf16.gmra.mxu0 %v1044
        %v1145 = vpop.f32.mrf.mxu0
        %v1146 = vadd.f32 0.0, %v1145
        %v1147 = vpop.f32.mrf.mxu0
        %v1148 = vadd.f32 0.0, %v1147
        %1149 = vdwg.mxu0
        %v1150 = vadd.f32 %v962, %v1111
        %v1151 = vadd.f32 %v963, %v1113
        %v1152 = vadd.f32 %v964, %v1116
        %v1153 = vadd.f32 %v965, %v1118
        %v1154 = vadd.f32 %v966, %v1121
        %v1155 = vadd.f32 %v967, %v1123
        %v1156 = vadd.f32 %v968, %v1126
        %v1157 = vadd.f32 %v969, %v1128
        %v1158 = vadd.f32 %v970, %v1131
        %v1159 = vadd.f32 %v971, %v1133
        %v1160 = vadd.f32 %v972, %v1136
        %v1161 = vadd.f32 %v973, %v1138
        %v1162 = vadd.f32 %v974, %v1141
        %v1163 = vadd.f32 %v975, %v1143
        %v1164 = vadd.f32 %v976, %v1146
        %v1165 = vadd.f32 %v977, %v1148
        %v1166 = vld [vmem:[#allocation2 + $0x4] sm:$0x8]
        %s1167 = scalar_lea.vmem [#allocation3], 320
        %v1168 = vld [vmem:[%s1167] sm:$0xf]
        %v1169 = vld [vmem:[%s1167 + $0x4] sm:$0xf]
        %v1170 = vld [vmem:[%s1167 + $0x8] sm:$0xf]
        %v1171 = vld [vmem:[%s1167 + $0xc] sm:$0xf]
        %v1172 = vld [vmem:[%s1167 + $0x10] sm:$0xf]
        %v1173 = vld [vmem:[%s1167 + $0x14] sm:$0xf]
        %v1174 = vld [vmem:[%s1167 + $0x18] sm:$0xf]
        %v1175 = vld [vmem:[%s1167 + $0x1c] sm:$0xf]
        %v1176 = vld [vmem:[%s1167 + $0x20] sm:$0xf]
        %v1177 = vld [vmem:[%s1167 + $0x24] sm:$0xf]
        %v1178 = vld [vmem:[%s1167 + $0x28] sm:$0xf]
        %v1179 = vld [vmem:[%s1167 + $0x2c] sm:$0xf]
        %v1180 = vld [vmem:[%s1167 + $0x30] sm:$0xf]
        %v1181 = vld [vmem:[%s1167 + $0x34] sm:$0xf]
        %v1182 = vld [vmem:[%s1167 + $0x38] sm:$0xf]
        %v1183 = vld [vmem:[%s1167 + $0x3c] sm:$0xf]
        %v1185 = vunpack.c.l.b16 %v1166
        %v1186 = vpack.c.b16 %v305, %v1185
        %vm1187 = vcmask 1044480
        %v1188 = vrot.slane %v1186, 3
        %v1189 = vrot.slane %v322, 3
        %v1190 = vsel %vm1187, %v1188, %v1189
        %v1191 = vrot.slane %v323, 3
        %v1192 = vsel %vm1187, %v1189, %v1191
        %v1193 = vrot.slane %v324, 3
        %v1194 = vsel %vm1187, %v1191, %v1193
        %v1195 = vrot.slane %v325, 3
        %v1196 = vsel %vm1187, %v1193, %v1195
        %v1197 = vrot.slane %v326, 3
        %v1198 = vsel %vm1187, %v1195, %v1197
        %v1199 = vrot.slane %v327, 3
        %v1200 = vsel %vm1187, %v1197, %v1199
        %v1201 = vrot.slane %v328, 3
        %v1202 = vsel %vm1187, %v1199, %v1201
        %v1203 = vrot.slane %v998, 3
        %v1204 = vsel %vm1187, %v1201, %v1203
        %v1229 = vunpack.c.l.b16 %v1168
        %v1230 = vunpack.c.l.b16 %v1169
        %v1231 = vunpack.c.l.b16 %v1170
        %v1232 = vunpack.c.l.b16 %v1171
        %v1233 = vunpack.c.l.b16 %v1172
        %v1234 = vunpack.c.l.b16 %v1173
        %v1235 = vunpack.c.l.b16 %v1174
        %v1236 = vunpack.c.l.b16 %v1175
        %v1237 = vunpack.c.l.b16 %v1176
        %v1238 = vunpack.c.l.b16 %v1177
        %v1239 = vunpack.c.l.b16 %v1178
        %v1240 = vunpack.c.l.b16 %v1179
        %v1241 = vunpack.c.l.b16 %v1180
        %v1242 = vunpack.c.l.b16 %v1181
        %v1243 = vunpack.c.l.b16 %v1182
        %v1244 = vunpack.c.l.b16 %v1183
        %v1245 = vpack.c.b16 %v1230, %v1229
        %v1246 = vpack.c.b16 %v1232, %v1231
        %v1247 = vpack.c.b16 %v1234, %v1233
        %v1248 = vpack.c.b16 %v1236, %v1235
        %v1249 = vpack.c.b16 %v1238, %v1237
        %v1250 = vpack.c.b16 %v1240, %v1239
        %v1251 = vpack.c.b16 %v1242, %v1241
        %v1252 = vpack.c.b16 %v1244, %v1243
        %1261 = vmatpush.bf16.msra.mxu0 %v1252
        %1262 = vmatpush.bf16.msra.mxu0 %v1251
        %1263 = vmatpush.bf16.msra.mxu0 %v1250
        %1264 = vmatpush.bf16.msra.mxu0 %v1249
        %1265 = vmatpush.bf16.msra.mxu0 %v1248
        %1266 = vmatpush.bf16.msra.mxu0 %v1247
        %1267 = vmatpush.bf16.msra.mxu0 %v1246
        %1268 = vmatpush.bf16.msra.mxu0 %v1245
        %1269 = vmatmul.bf16.gmra.mxu0 %v1190
        %v1270 = vpop.f32.mrf.mxu0
        %v1271 = vadd.f32 0.0, %v1270
        %v1272 = vpop.f32.mrf.mxu0
        %v1273 = vadd.f32 0.0, %v1272
        %1274 = vmatmul.bf16.gmra.mxu0 %v1192
        %v1275 = vpop.f32.mrf.mxu0
        %v1276 = vadd.f32 0.0, %v1275
        %v1277 = vpop.f32.mrf.mxu0
        %v1278 = vadd.f32 0.0, %v1277
        %1279 = vmatmul.bf16.gmra.mxu0 %v1194
        %v1280 = vpop.f32.mrf.mxu0
        %v1281 = vadd.f32 0.0, %v1280
        %v1282 = vpop.f32.mrf.mxu0
        %v1283 = vadd.f32 0.0, %v1282
        %1284 = vmatmul.bf16.gmra.mxu0 %v1196
        %v1285 = vpop.f32.mrf.mxu0
        %v1286 = vadd.f32 0.0, %v1285
        %v1287 = vpop.f32.mrf.mxu0
        %v1288 = vadd.f32 0.0, %v1287
        %1289 = vmatmul.bf16.gmra.mxu0 %v1198
        %v1290 = vpop.f32.mrf.mxu0
        %v1291 = vadd.f32 0.0, %v1290
        %v1292 = vpop.f32.mrf.mxu0
        %v1293 = vadd.f32 0.0, %v1292
        %1294 = vmatmul.bf16.gmra.mxu0 %v1200
        %v1295 = vpop.f32.mrf.mxu0
        %v1296 = vadd.f32 0.0, %v1295
        %v1297 = vpop.f32.mrf.mxu0
        %v1298 = vadd.f32 0.0, %v1297
        %1299 = vmatmul.bf16.gmra.mxu0 %v1202
        %v1300 = vpop.f32.mrf.mxu0
        %v1301 = vadd.f32 0.0, %v1300
        %v1302 = vpop.f32.mrf.mxu0
        %v1303 = vadd.f32 0.0, %v1302
        %1304 = vmatmul.bf16.gmra.mxu0 %v1204
        %v1305 = vpop.f32.mrf.mxu0
        %v1306 = vadd.f32 0.0, %v1305
        %v1307 = vpop.f32.mrf.mxu0
        %v1308 = vadd.f32 0.0, %v1307
        %1309 = vdwg.mxu0
        %v1310 = vadd.f32 %v1150, %v1271
        %v1311 = vadd.f32 %v1151, %v1273
        %v1312 = vadd.f32 %v1152, %v1276
        %v1313 = vadd.f32 %v1153, %v1278
        %v1314 = vadd.f32 %v1154, %v1281
        %v1315 = vadd.f32 %v1155, %v1283
        %v1316 = vadd.f32 %v1156, %v1286
        %v1317 = vadd.f32 %v1157, %v1288
        %v1318 = vadd.f32 %v1158, %v1291
        %v1319 = vadd.f32 %v1159, %v1293
        %v1320 = vadd.f32 %v1160, %v1296
        %v1321 = vadd.f32 %v1161, %v1298
        %v1322 = vadd.f32 %v1162, %v1301
        %v1323 = vadd.f32 %v1163, %v1303
        %v1324 = vadd.f32 %v1164, %v1306
        %v1325 = vadd.f32 %v1165, %v1308
        %v1326 = vld [vmem:[#allocation2 + $0x44] sm:$0xf]
        %s1327 = scalar_lea.vmem [#allocation3], 384
        %v1328 = vld [vmem:[%s1327] sm:$0xf]
        %v1329 = vld [vmem:[%s1327 + $0x4] sm:$0xf]
        %v1330 = vld [vmem:[%s1327 + $0x8] sm:$0xf]
        %v1331 = vld [vmem:[%s1327 + $0xc] sm:$0xf]
        %v1332 = vld [vmem:[%s1327 + $0x10] sm:$0xf]
        %v1333 = vld [vmem:[%s1327 + $0x14] sm:$0xf]
        %v1334 = vld [vmem:[%s1327 + $0x18] sm:$0xf]
        %v1335 = vld [vmem:[%s1327 + $0x1c] sm:$0xf]
        %v1336 = vld [vmem:[%s1327 + $0x20] sm:$0xf]
        %v1337 = vld [vmem:[%s1327 + $0x24] sm:$0xf]
        %v1338 = vld [vmem:[%s1327 + $0x28] sm:$0xf]
        %v1339 = vld [vmem:[%s1327 + $0x2c] sm:$0xf]
        %v1340 = vld [vmem:[%s1327 + $0x30] sm:$0xf]
        %v1341 = vld [vmem:[%s1327 + $0x34] sm:$0xf]
        %v1342 = vld [vmem:[%s1327 + $0x38] sm:$0xf]
        %v1343 = vld [vmem:[%s1327 + $0x3c] sm:$0xf]
        %v1345 = vunpack.c.l.b16 %v1326
        %v1346 = vpack.c.b16 %v1345, %v1345
        %vm1347 = vsmask.f32 4352
        %v1349 = vshrl.u32 %v1186, 16
        %v1351 = vrot.slane %v1349, 3
        %v1352 = vshll.u32 %v1186, 16
        %v1354 = vrot.slane %v1352, 4
        %v1355 = vor.u32 %v1351, %v1354
        %v1356 = vrot.slane %v469, 3
        %v1357 = vrot.slane %v465, 4
        %v1358 = vor.u32 %v1356, %v1357
        %v1359 = vsel %vm1347, %v1355, %v1358
        %v1360 = vrot.slane %v477, 3
        %v1361 = vrot.slane %v473, 4
        %v1362 = vor.u32 %v1360, %v1361
        %v1363 = vsel %vm1347, %v1358, %v1362
        %v1364 = vrot.slane %v485, 3
        %v1365 = vrot.slane %v481, 4
        %v1366 = vor.u32 %v1364, %v1365
        %v1367 = vsel %vm1347, %v1362, %v1366
        %v1368 = vrot.slane %v493, 3
        %v1369 = vrot.slane %v489, 4
        %v1370 = vor.u32 %v1368, %v1369
        %v1371 = vsel %vm1347, %v1366, %v1370
        %v1372 = vrot.slane %v501, 3
        %v1373 = vrot.slane %v497, 4
        %v1374 = vor.u32 %v1372, %v1373
        %v1375 = vsel %vm1347, %v1370, %v1374
        %v1376 = vrot.slane %v509, 3
        %v1377 = vrot.slane %v505, 4
        %v1378 = vor.u32 %v1376, %v1377
        %v1379 = vsel %vm1347, %v1374, %v1378
        %v1380 = vrot.slane %v517, 3
        %v1381 = vrot.slane %v513, 4
        %v1382 = vor.u32 %v1380, %v1381
        %v1383 = vsel %vm1347, %v1378, %v1382
        %v1385 = vshrl.u32 %v1346, 16
        %v1387 = vrot.slane %v1385, 3
        %v1388 = vshll.u32 %v1346, 16
        %v1390 = vrot.slane %v1388, 4
        %v1391 = vor.u32 %v1387, %v1390
        %v1392 = vsel %vm1347, %v1382, %v1391
        %v1417 = vunpack.c.l.b16 %v1328
        %v1418 = vunpack.c.l.b16 %v1329
        %v1419 = vunpack.c.l.b16 %v1330
        %v1420 = vunpack.c.l.b16 %v1331
        %v1421 = vunpack.c.l.b16 %v1332
        %v1422 = vunpack.c.l.b16 %v1333
        %v1423 = vunpack.c.l.b16 %v1334
        %v1424 = vunpack.c.l.b16 %v1335
        %v1425 = vunpack.c.l.b16 %v1336
        %v1426 = vunpack.c.l.b16 %v1337
        %v1427 = vunpack.c.l.b16 %v1338
        %v1428 = vunpack.c.l.b16 %v1339
        %v1429 = vunpack.c.l.b16 %v1340
        %v1430 = vunpack.c.l.b16 %v1341
        %v1431 = vunpack.c.l.b16 %v1342
        %v1432 = vunpack.c.l.b16 %v1343
        %v1433 = vpack.c.b16 %v1418, %v1417
        %v1434 = vpack.c.b16 %v1420, %v1419
        %v1435 = vpack.c.b16 %v1422, %v1421
        %v1436 = vpack.c.b16 %v1424, %v1423
        %v1437 = vpack.c.b16 %v1426, %v1425
        %v1438 = vpack.c.b16 %v1428, %v1427
        %v1439 = vpack.c.b16 %v1430, %v1429
        %v1440 = vpack.c.b16 %v1432, %v1431
        %1449 = vmatpush.bf16.msra.mxu0 %v1440
        %1450 = vmatpush.bf16.msra.mxu0 %v1439
        %1451 = vmatpush.bf16.msra.mxu0 %v1438
        %1452 = vmatpush.bf16.msra.mxu0 %v1437
        %1453 = vmatpush.bf16.msra.mxu0 %v1436
        %1454 = vmatpush.bf16.msra.mxu0 %v1435
        %1455 = vmatpush.bf16.msra.mxu0 %v1434
        %1456 = vmatpush.bf16.msra.mxu0 %v1433
        %1457 = vmatmul.bf16.gmra.mxu0 %v1359
        %v1458 = vpop.f32.mrf.mxu0
        %v1459 = vadd.f32 0.0, %v1458
        %v1460 = vpop.f32.mrf.mxu0
        %v1461 = vadd.f32 0.0, %v1460
        %1462 = vmatmul.bf16.gmra.mxu0 %v1363
        %v1463 = vpop.f32.mrf.mxu0
        %v1464 = vadd.f32 0.0, %v1463
        %v1465 = vpop.f32.mrf.mxu0
        %v1466 = vadd.f32 0.0, %v1465
        %1467 = vmatmul.bf16.gmra.mxu0 %v1367
        %v1468 = vpop.f32.mrf.mxu0
        %v1469 = vadd.f32 0.0, %v1468
        %v1470 = vpop.f32.mrf.mxu0
        %v1471 = vadd.f32 0.0, %v1470
        %1472 = vmatmul.bf16.gmra.mxu0 %v1371
        %v1473 = vpop.f32.mrf.mxu0
        %v1474 = vadd.f32 0.0, %v1473
        %v1475 = vpop.f32.mrf.mxu0
        %v1476 = vadd.f32 0.0, %v1475
        %1477 = vmatmul.bf16.gmra.mxu0 %v1375
        %v1478 = vpop.f32.mrf.mxu0
        %v1479 = vadd.f32 0.0, %v1478
        %v1480 = vpop.f32.mrf.mxu0
        %v1481 = vadd.f32 0.0, %v1480
        %1482 = vmatmul.bf16.gmra.mxu0 %v1379
        %v1483 = vpop.f32.mrf.mxu0
        %v1484 = vadd.f32 0.0, %v1483
        %v1485 = vpop.f32.mrf.mxu0
        %v1486 = vadd.f32 0.0, %v1485
        %1487 = vmatmul.bf16.gmra.mxu0 %v1383
        %v1488 = vpop.f32.mrf.mxu0
        %v1489 = vadd.f32 0.0, %v1488
        %v1490 = vpop.f32.mrf.mxu0
        %v1491 = vadd.f32 0.0, %v1490
        %1492 = vmatmul.bf16.gmra.mxu0 %v1392
        %v1493 = vpop.f32.mrf.mxu0
        %v1494 = vadd.f32 0.0, %v1493
        %v1495 = vpop.f32.mrf.mxu0
        %v1496 = vadd.f32 0.0, %v1495
        %1497 = vdwg.mxu0
        %v1498 = vadd.f32 %v1310, %v1459
        %v1499 = vadd.f32 %v1311, %v1461
        %v1500 = vadd.f32 %v1312, %v1464
        %v1501 = vadd.f32 %v1313, %v1466
        %v1502 = vadd.f32 %v1314, %v1469
        %v1503 = vadd.f32 %v1315, %v1471
        %v1504 = vadd.f32 %v1316, %v1474
        %v1505 = vadd.f32 %v1317, %v1476
        %v1506 = vadd.f32 %v1318, %v1479
        %v1507 = vadd.f32 %v1319, %v1481
        %v1508 = vadd.f32 %v1320, %v1484
        %v1509 = vadd.f32 %v1321, %v1486
        %v1510 = vadd.f32 %v1322, %v1489
        %v1511 = vadd.f32 %v1323, %v1491
        %v1512 = vadd.f32 %v1324, %v1494
        %v1513 = vadd.f32 %v1325, %v1496
        %s1514 = scalar_lea.vmem [#allocation3], 448
        %v1515 = vld [vmem:[%s1514] sm:$0xf]
        %v1516 = vld [vmem:[%s1514 + $0x4] sm:$0xf]
        %v1517 = vld [vmem:[%s1514 + $0x8] sm:$0xf]
        %v1518 = vld [vmem:[%s1514 + $0xc] sm:$0xf]
        %v1519 = vld [vmem:[%s1514 + $0x10] sm:$0xf]
        %v1520 = vld [vmem:[%s1514 + $0x14] sm:$0xf]
        %v1521 = vld [vmem:[%s1514 + $0x18] sm:$0xf]
        %v1522 = vld [vmem:[%s1514 + $0x1c] sm:$0xf]
        %v1523 = vld [vmem:[%s1514 + $0x20] sm:$0xf]
        %v1524 = vld [vmem:[%s1514 + $0x24] sm:$0xf]
        %v1525 = vld [vmem:[%s1514 + $0x28] sm:$0xf]
        %v1526 = vld [vmem:[%s1514 + $0x2c] sm:$0xf]
        %v1527 = vld [vmem:[%s1514 + $0x30] sm:$0xf]
        %v1528 = vld [vmem:[%s1514 + $0x34] sm:$0xf]
        %v1529 = vld [vmem:[%s1514 + $0x38] sm:$0xf]
        %v1530 = vld [vmem:[%s1514 + $0x3c] sm:$0xf]
        %v1531 = vpack.c.b16 %v306, %v305
        %v1532 = vpack.c.b16 %v308, %v307
        %v1533 = vpack.c.b16 %v310, %v309
        %v1534 = vpack.c.b16 %v312, %v311
        %v1535 = vpack.c.b16 %v314, %v313
        %v1536 = vpack.c.b16 %v316, %v315
        %v1537 = vpack.c.b16 %v318, %v317
        %v1538 = vpack.c.b16 %v1345, %v319
        %v1563 = vunpack.c.l.b16 %v1515
        %v1564 = vunpack.c.l.b16 %v1516
        %v1565 = vunpack.c.l.b16 %v1517
        %v1566 = vunpack.c.l.b16 %v1518
        %v1567 = vunpack.c.l.b16 %v1519
        %v1568 = vunpack.c.l.b16 %v1520
        %v1569 = vunpack.c.l.b16 %v1521
        %v1570 = vunpack.c.l.b16 %v1522
        %v1571 = vunpack.c.l.b16 %v1523
        %v1572 = vunpack.c.l.b16 %v1524
        %v1573 = vunpack.c.l.b16 %v1525
        %v1574 = vunpack.c.l.b16 %v1526
        %v1575 = vunpack.c.l.b16 %v1527
        %v1576 = vunpack.c.l.b16 %v1528
        %v1577 = vunpack.c.l.b16 %v1529
        %v1578 = vunpack.c.l.b16 %v1530
        %v1579 = vpack.c.b16 %v1564, %v1563
        %v1580 = vpack.c.b16 %v1566, %v1565
        %v1581 = vpack.c.b16 %v1568, %v1567
        %v1582 = vpack.c.b16 %v1570, %v1569
        %v1583 = vpack.c.b16 %v1572, %v1571
        %v1584 = vpack.c.b16 %v1574, %v1573
        %v1585 = vpack.c.b16 %v1576, %v1575
        %v1586 = vpack.c.b16 %v1578, %v1577
        %1595 = vmatpush.bf16.msra.mxu0 %v1586
        %1596 = vmatpush.bf16.msra.mxu0 %v1585
        %1597 = vmatpush.bf16.msra.mxu0 %v1584
        %1598 = vmatpush.bf16.msra.mxu0 %v1583
        %1599 = vmatpush.bf16.msra.mxu0 %v1582
        %1600 = vmatpush.bf16.msra.mxu0 %v1581
        %1601 = vmatpush.bf16.msra.mxu0 %v1580
        %1602 = vmatpush.bf16.msra.mxu0 %v1579
        %1603 = vmatmul.bf16.gmra.mxu0 %v1531
        %v1604 = vpop.f32.mrf.mxu0
        %v1605 = vadd.f32 0.0, %v1604
        %v1606 = vpop.f32.mrf.mxu0
        %v1607 = vadd.f32 0.0, %v1606
        %1608 = vmatmul.bf16.gmra.mxu0 %v1532
        %v1609 = vpop.f32.mrf.mxu0
        %v1610 = vadd.f32 0.0, %v1609
        %v1611 = vpop.f32.mrf.mxu0
        %v1612 = vadd.f32 0.0, %v1611
        %1613 = vmatmul.bf16.gmra.mxu0 %v1533
        %v1614 = vpop.f32.mrf.mxu0
        %v1615 = vadd.f32 0.0, %v1614
        %v1616 = vpop.f32.mrf.mxu0
        %v1617 = vadd.f32 0.0, %v1616
        %1618 = vmatmul.bf16.gmra.mxu0 %v1534
        %v1619 = vpop.f32.mrf.mxu0
        %v1620 = vadd.f32 0.0, %v1619
        %v1621 = vpop.f32.mrf.mxu0
        %v1622 = vadd.f32 0.0, %v1621
        %1623 = vmatmul.bf16.gmra.mxu0 %v1535
        %v1624 = vpop.f32.mrf.mxu0
        %v1625 = vadd.f32 0.0, %v1624
        %v1626 = vpop.f32.mrf.mxu0
        %v1627 = vadd.f32 0.0, %v1626
        %1628 = vmatmul.bf16.gmra.mxu0 %v1536
        %v1629 = vpop.f32.mrf.mxu0
        %v1630 = vadd.f32 0.0, %v1629
        %v1631 = vpop.f32.mrf.mxu0
        %v1632 = vadd.f32 0.0, %v1631
        %1633 = vmatmul.bf16.gmra.mxu0 %v1537
        %v1634 = vpop.f32.mrf.mxu0
        %v1635 = vadd.f32 0.0, %v1634
        %v1636 = vpop.f32.mrf.mxu0
        %v1637 = vadd.f32 0.0, %v1636
        %1638 = vmatmul.bf16.gmra.mxu0 %v1538
        %v1639 = vpop.f32.mrf.mxu0
        %v1640 = vadd.f32 0.0, %v1639
        %v1641 = vpop.f32.mrf.mxu0
        %v1642 = vadd.f32 0.0, %v1641
        %1643 = vdwg.mxu0
        %v1644 = vadd.f32 %v1498, %v1605
        %v1645 = vadd.f32 %v1499, %v1607
        %v1646 = vadd.f32 %v1500, %v1610
        %v1647 = vadd.f32 %v1501, %v1612
        %v1648 = vadd.f32 %v1502, %v1615
        %v1649 = vadd.f32 %v1503, %v1617
        %v1650 = vadd.f32 %v1504, %v1620
        %v1651 = vadd.f32 %v1505, %v1622
        %v1652 = vadd.f32 %v1506, %v1625
        %v1653 = vadd.f32 %v1507, %v1627
        %v1654 = vadd.f32 %v1508, %v1630
        %v1655 = vadd.f32 %v1509, %v1632
        %v1656 = vadd.f32 %v1510, %v1635
        %v1657 = vadd.f32 %v1511, %v1637
        %v1658 = vadd.f32 %v1512, %v1640
        %v1659 = vadd.f32 %v1513, %v1642
        %v1660 = vld [vmem:[#allocation2 + $0x8] sm:$0xf]
        %v1661 = vld [vmem:[#allocation2 + $0xc] sm:$0xf]
        %v1662 = vld [vmem:[#allocation2 + $0x10] sm:$0xf]
        %v1663 = vld [vmem:[#allocation2 + $0x14] sm:$0xf]
        %v1664 = vld [vmem:[#allocation2 + $0x18] sm:$0xf]
        %v1665 = vld [vmem:[#allocation2 + $0x1c] sm:$0xf]
        %v1666 = vld [vmem:[#allocation2 + $0x20] sm:$0xf]
        %v1667 = vld [vmem:[#allocation2 + $0x24] sm:$0xf]
        %v1668 = vld [vmem:[#allocation2 + $0x28] sm:$0xf]
        %v1669 = vld [vmem:[#allocation2 + $0x2c] sm:$0xf]
        %v1670 = vld [vmem:[#allocation2 + $0x30] sm:$0xf]
        %v1671 = vld [vmem:[#allocation2 + $0x34] sm:$0xf]
        %v1672 = vld [vmem:[#allocation2 + $0x38] sm:$0xf]
        %v1673 = vld [vmem:[#allocation2 + $0x3c] sm:$0xf]
        %v1674 = vld [vmem:[#allocation2 + $0x40] sm:$0xf]
        %v1675 = vld [vmem:[#allocation2 + $0x44] sm:$0xf]
        %v1676 = vld [vmem:[#allocation2 + $0x48] sm:$0x1]
        %s1677 = scalar_lea.vmem [#allocation3], 512
        %v1678 = vld [vmem:[%s1677] sm:$0xf]
        %v1679 = vld [vmem:[%s1677 + $0x4] sm:$0xf]
        %v1680 = vld [vmem:[%s1677 + $0x8] sm:$0xf]
        %v1681 = vld [vmem:[%s1677 + $0xc] sm:$0xf]
        %v1682 = vld [vmem:[%s1677 + $0x10] sm:$0xf]
        %v1683 = vld [vmem:[%s1677 + $0x14] sm:$0xf]
        %v1684 = vld [vmem:[%s1677 + $0x18] sm:$0xf]
        %v1685 = vld [vmem:[%s1677 + $0x1c] sm:$0xf]
        %v1686 = vld [vmem:[%s1677 + $0x20] sm:$0xf]
        %v1687 = vld [vmem:[%s1677 + $0x24] sm:$0xf]
        %v1688 = vld [vmem:[%s1677 + $0x28] sm:$0xf]
        %v1689 = vld [vmem:[%s1677 + $0x2c] sm:$0xf]
        %v1690 = vld [vmem:[%s1677 + $0x30] sm:$0xf]
        %v1691 = vld [vmem:[%s1677 + $0x34] sm:$0xf]
        %v1692 = vld [vmem:[%s1677 + $0x38] sm:$0xf]
        %v1693 = vld [vmem:[%s1677 + $0x3c] sm:$0xf]
        %v1711 = vunpack.c.l.b16 %v1660
        %v1712 = vunpack.c.l.b16 %v1661
        %v1713 = vunpack.c.l.b16 %v1662
        %v1714 = vunpack.c.l.b16 %v1663
        %v1715 = vunpack.c.l.b16 %v1664
        %v1716 = vunpack.c.l.b16 %v1665
        %v1717 = vunpack.c.l.b16 %v1666
        %v1718 = vunpack.c.l.b16 %v1667
        %v1719 = vunpack.c.l.b16 %v1668
        %v1720 = vunpack.c.l.b16 %v1669
        %v1721 = vunpack.c.l.b16 %v1670
        %v1722 = vunpack.c.l.b16 %v1671
        %v1723 = vunpack.c.l.b16 %v1672
        %v1724 = vunpack.c.l.b16 %v1673
        %v1725 = vunpack.c.l.b16 %v1674
        %v1726 = vunpack.c.l.b16 %v1675
        %v1727 = vunpack.c.l.b16 %v1676
        %v1728 = vpack.c.b16 %v1712, %v1711
        %v1729 = vpack.c.b16 %v1714, %v1713
        %v1730 = vpack.c.b16 %v1716, %v1715
        %v1731 = vpack.c.b16 %v1718, %v1717
        %v1732 = vpack.c.b16 %v1720, %v1719
        %v1733 = vpack.c.b16 %v1722, %v1721
        %v1734 = vpack.c.b16 %v1724, %v1723
        %v1735 = vpack.c.b16 %v1726, %v1725
        %v1736 = vpack.c.b16 %v1727, %v1727
        %v1738 = vshrl.u32 %v1728, 16
        %v1740 = vshll.u32 %v1728, 16
        %v1742 = vrot.slane %v1740, 1
        %v1743 = vor.u32 %v1738, %v1742
        %v1745 = vshll.u32 %v1729, 16
        %v1747 = vrot.slane %v1745, 1
        %v1748 = vsel %vm456, %v1743, %v1747
        %v1749 = vshrl.u32 %v1729, 16
        %v1751 = vor.u32 %v1749, %v1747
        %v1753 = vshll.u32 %v1730, 16
        %v1755 = vrot.slane %v1753, 1
        %v1756 = vsel %vm456, %v1751, %v1755
        %v1757 = vshrl.u32 %v1730, 16
        %v1759 = vor.u32 %v1757, %v1755
        %v1761 = vshll.u32 %v1731, 16
        %v1763 = vrot.slane %v1761, 1
        %v1764 = vsel %vm456, %v1759, %v1763
        %v1765 = vshrl.u32 %v1731, 16
        %v1767 = vor.u32 %v1765, %v1763
        %v1769 = vshll.u32 %v1732, 16
        %v1771 = vrot.slane %v1769, 1
        %v1772 = vsel %vm456, %v1767, %v1771
        %v1773 = vshrl.u32 %v1732, 16
        %v1775 = vor.u32 %v1773, %v1771
        %v1777 = vshll.u32 %v1733, 16
        %v1779 = vrot.slane %v1777, 1
        %v1780 = vsel %vm456, %v1775, %v1779
        %v1781 = vshrl.u32 %v1733, 16
        %v1783 = vor.u32 %v1781, %v1779
        %v1785 = vshll.u32 %v1734, 16
        %v1787 = vrot.slane %v1785, 1
        %v1788 = vsel %vm456, %v1783, %v1787
        %v1789 = vshrl.u32 %v1734, 16
        %v1791 = vor.u32 %v1789, %v1787
        %v1793 = vshll.u32 %v1735, 16
        %v1795 = vrot.slane %v1793, 1
        %v1796 = vsel %vm456, %v1791, %v1795
        %v1797 = vshrl.u32 %v1735, 16
        %v1799 = vor.u32 %v1797, %v1795
        %v1801 = vshll.u32 %v1736, 16
        %v1803 = vrot.slane %v1801, 1
        %v1804 = vsel %vm456, %v1799, %v1803
        %v1829 = vunpack.c.l.b16 %v1678
        %v1830 = vunpack.c.l.b16 %v1679
        %v1831 = vunpack.c.l.b16 %v1680
        %v1832 = vunpack.c.l.b16 %v1681
        %v1833 = vunpack.c.l.b16 %v1682
        %v1834 = vunpack.c.l.b16 %v1683
        %v1835 = vunpack.c.l.b16 %v1684
        %v1836 = vunpack.c.l.b16 %v1685
        %v1837 = vunpack.c.l.b16 %v1686
        %v1838 = vunpack.c.l.b16 %v1687
        %v1839 = vunpack.c.l.b16 %v1688
        %v1840 = vunpack.c.l.b16 %v1689
        %v1841 = vunpack.c.l.b16 %v1690
        %v1842 = vunpack.c.l.b16 %v1691
        %v1843 = vunpack.c.l.b16 %v1692
        %v1844 = vunpack.c.l.b16 %v1693
        %v1845 = vpack.c.b16 %v1830, %v1829
        %v1846 = vpack.c.b16 %v1832, %v1831
        %v1847 = vpack.c.b16 %v1834, %v1833
        %v1848 = vpack.c.b16 %v1836, %v1835
        %v1849 = vpack.c.b16 %v1838, %v1837
        %v1850 = vpack.c.b16 %v1840, %v1839
        %v1851 = vpack.c.b16 %v1842, %v1841
        %v1852 = vpack.c.b16 %v1844, %v1843
        %1861 = vmatpush.bf16.msra.mxu0 %v1852
        %1862 = vmatpush.bf16.msra.mxu0 %v1851
        %1863 = vmatpush.bf16.msra.mxu0 %v1850
        %1864 = vmatpush.bf16.msra.mxu0 %v1849
        %1865 = vmatpush.bf16.msra.mxu0 %v1848
        %1866 = vmatpush.bf16.msra.mxu0 %v1847
        %1867 = vmatpush.bf16.msra.mxu0 %v1846
        %1868 = vmatpush.bf16.msra.mxu0 %v1845
        %1869 = vmatmul.bf16.gmra.mxu0 %v1748
        %v1870 = vpop.f32.mrf.mxu0
        %v1871 = vadd.f32 0.0, %v1870
        %v1872 = vpop.f32.mrf.mxu0
        %v1873 = vadd.f32 0.0, %v1872
        %1874 = vmatmul.bf16.gmra.mxu0 %v1756
        %v1875 = vpop.f32.mrf.mxu0
        %v1876 = vadd.f32 0.0, %v1875
        %v1877 = vpop.f32.mrf.mxu0
        %v1878 = vadd.f32 0.0, %v1877
        %1879 = vmatmul.bf16.gmra.mxu0 %v1764
        %v1880 = vpop.f32.mrf.mxu0
        %v1881 = vadd.f32 0.0, %v1880
        %v1882 = vpop.f32.mrf.mxu0
        %v1883 = vadd.f32 0.0, %v1882
        %1884 = vmatmul.bf16.gmra.mxu0 %v1772
        %v1885 = vpop.f32.mrf.mxu0
        %v1886 = vadd.f32 0.0, %v1885
        %v1887 = vpop.f32.mrf.mxu0
        %v1888 = vadd.f32 0.0, %v1887
        %1889 = vmatmul.bf16.gmra.mxu0 %v1780
        %v1890 = vpop.f32.mrf.mxu0
        %v1891 = vadd.f32 0.0, %v1890
        %v1892 = vpop.f32.mrf.mxu0
        %v1893 = vadd.f32 0.0, %v1892
        %1894 = vmatmul.bf16.gmra.mxu0 %v1788
        %v1895 = vpop.f32.mrf.mxu0
        %v1896 = vadd.f32 0.0, %v1895
        %v1897 = vpop.f32.mrf.mxu0
        %v1898 = vadd.f32 0.0, %v1897
        %1899 = vmatmul.bf16.gmra.mxu0 %v1796
        %v1900 = vpop.f32.mrf.mxu0
        %v1901 = vadd.f32 0.0, %v1900
        %v1902 = vpop.f32.mrf.mxu0
        %v1903 = vadd.f32 0.0, %v1902
        %1904 = vmatmul.bf16.gmra.mxu0 %v1804
        %v1905 = vpop.f32.mrf.mxu0
        %v1906 = vadd.f32 0.0, %v1905
        %v1907 = vpop.f32.mrf.mxu0
        %v1908 = vadd.f32 0.0, %v1907
        %1909 = vdwg.mxu0
        %v1910 = vadd.f32 %v1644, %v1871
        %v1911 = vadd.f32 %v1645, %v1873
        %v1912 = vadd.f32 %v1646, %v1876
        %v1913 = vadd.f32 %v1647, %v1878
        %v1914 = vadd.f32 %v1648, %v1881
        %v1915 = vadd.f32 %v1649, %v1883
        %v1916 = vadd.f32 %v1650, %v1886
        %v1917 = vadd.f32 %v1651, %v1888
        %v1918 = vadd.f32 %v1652, %v1891
        %v1919 = vadd.f32 %v1653, %v1893
        %v1920 = vadd.f32 %v1654, %v1896
        %v1921 = vadd.f32 %v1655, %v1898
        %v1922 = vadd.f32 %v1656, %v1901
        %v1923 = vadd.f32 %v1657, %v1903
        %v1924 = vadd.f32 %v1658, %v1906
        %v1925 = vadd.f32 %v1659, %v1908
        %v1926 = vld [vmem:[#allocation2 + $0x8] sm:$0xe]
        %s1927 = scalar_lea.vmem [#allocation3], 576
        %v1928 = vld [vmem:[%s1927] sm:$0xf]
        %v1929 = vld [vmem:[%s1927 + $0x4] sm:$0xf]
        %v1930 = vld [vmem:[%s1927 + $0x8] sm:$0xf]
        %v1931 = vld [vmem:[%s1927 + $0xc] sm:$0xf]
        %v1932 = vld [vmem:[%s1927 + $0x10] sm:$0xf]
        %v1933 = vld [vmem:[%s1927 + $0x14] sm:$0xf]
        %v1934 = vld [vmem:[%s1927 + $0x18] sm:$0xf]
        %v1935 = vld [vmem:[%s1927 + $0x1c] sm:$0xf]
        %v1936 = vld [vmem:[%s1927 + $0x20] sm:$0xf]
        %v1937 = vld [vmem:[%s1927 + $0x24] sm:$0xf]
        %v1938 = vld [vmem:[%s1927 + $0x28] sm:$0xf]
        %v1939 = vld [vmem:[%s1927 + $0x2c] sm:$0xf]
        %v1940 = vld [vmem:[%s1927 + $0x30] sm:$0xf]
        %v1941 = vld [vmem:[%s1927 + $0x34] sm:$0xf]
        %v1942 = vld [vmem:[%s1927 + $0x38] sm:$0xf]
        %v1943 = vld [vmem:[%s1927 + $0x3c] sm:$0xf]
        %v1945 = vunpack.c.l.b16 %v1926
        %v1946 = vpack.c.b16 %v1712, %v1945
        %v1947 = vrot.slane %v1946, 1
        %v1948 = vrot.slane %v1729, 1
        %v1949 = vsel %vm330, %v1947, %v1948
        %v1950 = vrot.slane %v1730, 1
        %v1951 = vsel %vm330, %v1948, %v1950
        %v1952 = vrot.slane %v1731, 1
        %v1953 = vsel %vm330, %v1950, %v1952
        %v1954 = vrot.slane %v1732, 1
        %v1955 = vsel %vm330, %v1952, %v1954
        %v1956 = vrot.slane %v1733, 1
        %v1957 = vsel %vm330, %v1954, %v1956
        %v1958 = vrot.slane %v1734, 1
        %v1959 = vsel %vm330, %v1956, %v1958
        %v1960 = vrot.slane %v1735, 1
        %v1961 = vsel %vm330, %v1958, %v1960
        %v1962 = vrot.slane %v1736, 1
        %v1963 = vsel %vm330, %v1960, %v1962
        %v1988 = vunpack.c.l.b16 %v1928
        %v1989 = vunpack.c.l.b16 %v1929
        %v1990 = vunpack.c.l.b16 %v1930
        %v1991 = vunpack.c.l.b16 %v1931
        %v1992 = vunpack.c.l.b16 %v1932
        %v1993 = vunpack.c.l.b16 %v1933
        %v1994 = vunpack.c.l.b16 %v1934
        %v1995 = vunpack.c.l.b16 %v1935
        %v1996 = vunpack.c.l.b16 %v1936
        %v1997 = vunpack.c.l.b16 %v1937
        %v1998 = vunpack.c.l.b16 %v1938
        %v1999 = vunpack.c.l.b16 %v1939
        %v2000 = vunpack.c.l.b16 %v1940
        %v2001 = vunpack.c.l.b16 %v1941
        %v2002 = vunpack.c.l.b16 %v1942
        %v2003 = vunpack.c.l.b16 %v1943
        %v2004 = vpack.c.b16 %v1989, %v1988
        %v2005 = vpack.c.b16 %v1991, %v1990
        %v2006 = vpack.c.b16 %v1993, %v1992
        %v2007 = vpack.c.b16 %v1995, %v1994
        %v2008 = vpack.c.b16 %v1997, %v1996
        %v2009 = vpack.c.b16 %v1999, %v1998
        %v2010 = vpack.c.b16 %v2001, %v2000
        %v2011 = vpack.c.b16 %v2003, %v2002
        %2020 = vmatpush.bf16.msra.mxu0 %v2011
        %2021 = vmatpush.bf16.msra.mxu0 %v2010
        %2022 = vmatpush.bf16.msra.mxu0 %v2009
        %2023 = vmatpush.bf16.msra.mxu0 %v2008
        %2024 = vmatpush.bf16.msra.mxu0 %v2007
        %2025 = vmatpush.bf16.msra.mxu0 %v2006
        %2026 = vmatpush.bf16.msra.mxu0 %v2005
        %2027 = vmatpush.bf16.msra.mxu0 %v2004
        %2028 = vmatmul.bf16.gmra.mxu0 %v1949
        %v2029 = vpop.f32.mrf.mxu0
        %v2030 = vadd.f32 0.0, %v2029
        %v2031 = vpop.f32.mrf.mxu0
        %v2032 = vadd.f32 0.0, %v2031
        %2033 = vmatmul.bf16.gmra.mxu0 %v1951
        %v2034 = vpop.f32.mrf.mxu0
        %v2035 = vadd.f32 0.0, %v2034
        %v2036 = vpop.f32.mrf.mxu0
        %v2037 = vadd.f32 0.0, %v2036
        %2038 = vmatmul.bf16.gmra.mxu0 %v1953
        %v2039 = vpop.f32.mrf.mxu0
        %v2040 = vadd.f32 0.0, %v2039
        %v2041 = vpop.f32.mrf.mxu0
        %v2042 = vadd.f32 0.0, %v2041
        %2043 = vmatmul.bf16.gmra.mxu0 %v1955
        %v2044 = vpop.f32.mrf.mxu0
        %v2045 = vadd.f32 0.0, %v2044
        %v2046 = vpop.f32.mrf.mxu0
        %v2047 = vadd.f32 0.0, %v2046
        %2048 = vmatmul.bf16.gmra.mxu0 %v1957
        %v2049 = vpop.f32.mrf.mxu0
        %v2050 = vadd.f32 0.0, %v2049
        %v2051 = vpop.f32.mrf.mxu0
        %v2052 = vadd.f32 0.0, %v2051
        %2053 = vmatmul.bf16.gmra.mxu0 %v1959
        %v2054 = vpop.f32.mrf.mxu0
        %v2055 = vadd.f32 0.0, %v2054
        %v2056 = vpop.f32.mrf.mxu0
        %v2057 = vadd.f32 0.0, %v2056
        %2058 = vmatmul.bf16.gmra.mxu0 %v1961
        %v2059 = vpop.f32.mrf.mxu0
        %v2060 = vadd.f32 0.0, %v2059
        %v2061 = vpop.f32.mrf.mxu0
        %v2062 = vadd.f32 0.0, %v2061
        %2063 = vmatmul.bf16.gmra.mxu0 %v1963
        %v2064 = vpop.f32.mrf.mxu0
        %v2065 = vadd.f32 0.0, %v2064
        %v2066 = vpop.f32.mrf.mxu0
        %v2067 = vadd.f32 0.0, %v2066
        %2068 = vdwg.mxu0
        %v2069 = vadd.f32 %v1910, %v2030
        %v2070 = vadd.f32 %v1911, %v2032
        %v2071 = vadd.f32 %v1912, %v2035
        %v2072 = vadd.f32 %v1913, %v2037
        %v2073 = vadd.f32 %v1914, %v2040
        %v2074 = vadd.f32 %v1915, %v2042
        %v2075 = vadd.f32 %v1916, %v2045
        %v2076 = vadd.f32 %v1917, %v2047
        %v2077 = vadd.f32 %v1918, %v2050
        %v2078 = vadd.f32 %v1919, %v2052
        %v2079 = vadd.f32 %v1920, %v2055
        %v2080 = vadd.f32 %v1921, %v2057
        %v2081 = vadd.f32 %v1922, %v2060
        %v2082 = vadd.f32 %v1923, %v2062
        %v2083 = vadd.f32 %v1924, %v2065
        %v2084 = vadd.f32 %v1925, %v2067
        %v2085 = vld [vmem:[#allocation2 + $0x48] sm:$0x3]
        %s2086 = scalar_lea.vmem [#allocation3], 640
        %v2087 = vld [vmem:[%s2086] sm:$0xf]
        %v2088 = vld [vmem:[%s2086 + $0x4] sm:$0xf]
        %v2089 = vld [vmem:[%s2086 + $0x8] sm:$0xf]
        %v2090 = vld [vmem:[%s2086 + $0xc] sm:$0xf]
        %v2091 = vld [vmem:[%s2086 + $0x10] sm:$0xf]
        %v2092 = vld [vmem:[%s2086 + $0x14] sm:$0xf]
        %v2093 = vld [vmem:[%s2086 + $0x18] sm:$0xf]
        %v2094 = vld [vmem:[%s2086 + $0x1c] sm:$0xf]
        %v2095 = vld [vmem:[%s2086 + $0x20] sm:$0xf]
        %v2096 = vld [vmem:[%s2086 + $0x24] sm:$0xf]
        %v2097 = vld [vmem:[%s2086 + $0x28] sm:$0xf]
        %v2098 = vld [vmem:[%s2086 + $0x2c] sm:$0xf]
        %v2099 = vld [vmem:[%s2086 + $0x30] sm:$0xf]
        %v2100 = vld [vmem:[%s2086 + $0x34] sm:$0xf]
        %v2101 = vld [vmem:[%s2086 + $0x38] sm:$0xf]
        %v2102 = vld [vmem:[%s2086 + $0x3c] sm:$0xf]
        %v2104 = vunpack.c.l.b16 %v2085
        %v2105 = vpack.c.b16 %v2104, %v2104
        %v2107 = vshrl.u32 %v1946, 16
        %v2109 = vrot.slane %v2107, 1
        %v2110 = vshll.u32 %v1946, 16
        %v2112 = vrot.slane %v2110, 2
        %v2113 = vor.u32 %v2109, %v2112
        %v2114 = vrot.slane %v1749, 1
        %v2115 = vrot.slane %v1745, 2
        %v2116 = vor.u32 %v2114, %v2115
        %v2117 = vsel %vm651, %v2113, %v2116
        %v2118 = vrot.slane %v1757, 1
        %v2119 = vrot.slane %v1753, 2
        %v2120 = vor.u32 %v2118, %v2119
        %v2121 = vsel %vm651, %v2116, %v2120
        %v2122 = vrot.slane %v1765, 1
        %v2123 = vrot.slane %v1761, 2
        %v2124 = vor.u32 %v2122, %v2123
        %v2125 = vsel %vm651, %v2120, %v2124
        %v2126 = vrot.slane %v1773, 1
        %v2127 = vrot.slane %v1769, 2
        %v2128 = vor.u32 %v2126, %v2127
        %v2129 = vsel %vm651, %v2124, %v2128
        %v2130 = vrot.slane %v1781, 1
        %v2131 = vrot.slane %v1777, 2
        %v2132 = vor.u32 %v2130, %v2131
        %v2133 = vsel %vm651, %v2128, %v2132
        %v2134 = vrot.slane %v1789, 1
        %v2135 = vrot.slane %v1785, 2
        %v2136 = vor.u32 %v2134, %v2135
        %v2137 = vsel %vm651, %v2132, %v2136
        %v2138 = vrot.slane %v1797, 1
        %v2139 = vrot.slane %v1793, 2
        %v2140 = vor.u32 %v2138, %v2139
        %v2141 = vsel %vm651, %v2136, %v2140
        %v2143 = vshrl.u32 %v2105, 16
        %v2145 = vrot.slane %v2143, 1
        %v2146 = vshll.u32 %v2105, 16
        %v2148 = vrot.slane %v2146, 2
        %v2149 = vor.u32 %v2145, %v2148
        %v2150 = vsel %vm651, %v2140, %v2149
        %v2175 = vunpack.c.l.b16 %v2087
        %v2176 = vunpack.c.l.b16 %v2088
        %v2177 = vunpack.c.l.b16 %v2089
        %v2178 = vunpack.c.l.b16 %v2090
        %v2179 = vunpack.c.l.b16 %v2091
        %v2180 = vunpack.c.l.b16 %v2092
        %v2181 = vunpack.c.l.b16 %v2093
        %v2182 = vunpack.c.l.b16 %v2094
        %v2183 = vunpack.c.l.b16 %v2095
        %v2184 = vunpack.c.l.b16 %v2096
        %v2185 = vunpack.c.l.b16 %v2097
        %v2186 = vunpack.c.l.b16 %v2098
        %v2187 = vunpack.c.l.b16 %v2099
        %v2188 = vunpack.c.l.b16 %v2100
        %v2189 = vunpack.c.l.b16 %v2101
        %v2190 = vunpack.c.l.b16 %v2102
        %v2191 = vpack.c.b16 %v2176, %v2175
        %v2192 = vpack.c.b16 %v2178, %v2177
        %v2193 = vpack.c.b16 %v2180, %v2179
        %v2194 = vpack.c.b16 %v2182, %v2181
        %v2195 = vpack.c.b16 %v2184, %v2183
        %v2196 = vpack.c.b16 %v2186, %v2185
        %v2197 = vpack.c.b16 %v2188, %v2187
        %v2198 = vpack.c.b16 %v2190, %v2189
        %2207 = vmatpush.bf16.msra.mxu0 %v2198
        %2208 = vmatpush.bf16.msra.mxu0 %v2197
        %2209 = vmatpush.bf16.msra.mxu0 %v2196
        %2210 = vmatpush.bf16.msra.mxu0 %v2195
        %2211 = vmatpush.bf16.msra.mxu0 %v2194
        %2212 = vmatpush.bf16.msra.mxu0 %v2193
        %2213 = vmatpush.bf16.msra.mxu0 %v2192
        %2214 = vmatpush.bf16.msra.mxu0 %v2191
        %2215 = vmatmul.bf16.gmra.mxu0 %v2117
        %v2216 = vpop.f32.mrf.mxu0
        %v2217 = vadd.f32 0.0, %v2216
        %v2218 = vpop.f32.mrf.mxu0
        %v2219 = vadd.f32 0.0, %v2218
        %2220 = vmatmul.bf16.gmra.mxu0 %v2121
        %v2221 = vpop.f32.mrf.mxu0
        %v2222 = vadd.f32 0.0, %v2221
        %v2223 = vpop.f32.mrf.mxu0
        %v2224 = vadd.f32 0.0, %v2223
        %2225 = vmatmul.bf16.gmra.mxu0 %v2125
        %v2226 = vpop.f32.mrf.mxu0
        %v2227 = vadd.f32 0.0, %v2226
        %v2228 = vpop.f32.mrf.mxu0
        %v2229 = vadd.f32 0.0, %v2228
        %2230 = vmatmul.bf16.gmra.mxu0 %v2129
        %v2231 = vpop.f32.mrf.mxu0
        %v2232 = vadd.f32 0.0, %v2231
        %v2233 = vpop.f32.mrf.mxu0
        %v2234 = vadd.f32 0.0, %v2233
        %2235 = vmatmul.bf16.gmra.mxu0 %v2133
        %v2236 = vpop.f32.mrf.mxu0
        %v2237 = vadd.f32 0.0, %v2236
        %v2238 = vpop.f32.mrf.mxu0
        %v2239 = vadd.f32 0.0, %v2238
        %2240 = vmatmul.bf16.gmra.mxu0 %v2137
        %v2241 = vpop.f32.mrf.mxu0
        %v2242 = vadd.f32 0.0, %v2241
        %v2243 = vpop.f32.mrf.mxu0
        %v2244 = vadd.f32 0.0, %v2243
        %2245 = vmatmul.bf16.gmra.mxu0 %v2141
        %v2246 = vpop.f32.mrf.mxu0
        %v2247 = vadd.f32 0.0, %v2246
        %v2248 = vpop.f32.mrf.mxu0
        %v2249 = vadd.f32 0.0, %v2248
        %2250 = vmatmul.bf16.gmra.mxu0 %v2150
        %v2251 = vpop.f32.mrf.mxu0
        %v2252 = vadd.f32 0.0, %v2251
        %v2253 = vpop.f32.mrf.mxu0
        %v2254 = vadd.f32 0.0, %v2253
        %2255 = vdwg.mxu0
        %v2256 = vadd.f32 %v2069, %v2217
        %v2257 = vadd.f32 %v2070, %v2219
        %v2258 = vadd.f32 %v2071, %v2222
        %v2259 = vadd.f32 %v2072, %v2224
        %v2260 = vadd.f32 %v2073, %v2227
        %v2261 = vadd.f32 %v2074, %v2229
        %v2262 = vadd.f32 %v2075, %v2232
        %v2263 = vadd.f32 %v2076, %v2234
        %v2264 = vadd.f32 %v2077, %v2237
        %v2265 = vadd.f32 %v2078, %v2239
        %v2266 = vadd.f32 %v2079, %v2242
        %v2267 = vadd.f32 %v2080, %v2244
        %v2268 = vadd.f32 %v2081, %v2247
        %v2269 = vadd.f32 %v2082, %v2249
        %v2270 = vadd.f32 %v2083, %v2252
        %v2271 = vadd.f32 %v2084, %v2254
        %v2272 = vld [vmem:[#allocation2 + $0x8] sm:$0xc]
        %s2273 = scalar_lea.vmem [#allocation3], 704
        %v2274 = vld [vmem:[%s2273] sm:$0xf]
        %v2275 = vld [vmem:[%s2273 + $0x4] sm:$0xf]
        %v2276 = vld [vmem:[%s2273 + $0x8] sm:$0xf]
        %v2277 = vld [vmem:[%s2273 + $0xc] sm:$0xf]
        %v2278 = vld [vmem:[%s2273 + $0x10] sm:$0xf]
        %v2279 = vld [vmem:[%s2273 + $0x14] sm:$0xf]
        %v2280 = vld [vmem:[%s2273 + $0x18] sm:$0xf]
        %v2281 = vld [vmem:[%s2273 + $0x1c] sm:$0xf]
        %v2282 = vld [vmem:[%s2273 + $0x20] sm:$0xf]
        %v2283 = vld [vmem:[%s2273 + $0x24] sm:$0xf]
        %v2284 = vld [vmem:[%s2273 + $0x28] sm:$0xf]
        %v2285 = vld [vmem:[%s2273 + $0x2c] sm:$0xf]
        %v2286 = vld [vmem:[%s2273 + $0x30] sm:$0xf]
        %v2287 = vld [vmem:[%s2273 + $0x34] sm:$0xf]
        %v2288 = vld [vmem:[%s2273 + $0x38] sm:$0xf]
        %v2289 = vld [vmem:[%s2273 + $0x3c] sm:$0xf]
        %v2291 = vunpack.c.l.b16 %v2272
        %v2292 = vpack.c.b16 %v1712, %v2291
        %v2293 = vrot.slane %v2292, 2
        %v2294 = vrot.slane %v1729, 2
        %v2295 = vsel %vm839, %v2293, %v2294
        %v2296 = vrot.slane %v1730, 2
        %v2297 = vsel %vm839, %v2294, %v2296
        %v2298 = vrot.slane %v1731, 2
        %v2299 = vsel %vm839, %v2296, %v2298
        %v2300 = vrot.slane %v1732, 2
        %v2301 = vsel %vm839, %v2298, %v2300
        %v2302 = vrot.slane %v1733, 2
        %v2303 = vsel %vm839, %v2300, %v2302
        %v2304 = vrot.slane %v1734, 2
        %v2305 = vsel %vm839, %v2302, %v2304
        %v2306 = vrot.slane %v1735, 2
        %v2307 = vsel %vm839, %v2304, %v2306
        %v2308 = vrot.slane %v2105, 2
        %v2309 = vsel %vm839, %v2306, %v2308
        %v2334 = vunpack.c.l.b16 %v2274
        %v2335 = vunpack.c.l.b16 %v2275
        %v2336 = vunpack.c.l.b16 %v2276
        %v2337 = vunpack.c.l.b16 %v2277
        %v2338 = vunpack.c.l.b16 %v2278
        %v2339 = vunpack.c.l.b16 %v2279
        %v2340 = vunpack.c.l.b16 %v2280
        %v2341 = vunpack.c.l.b16 %v2281
        %v2342 = vunpack.c.l.b16 %v2282
        %v2343 = vunpack.c.l.b16 %v2283
        %v2344 = vunpack.c.l.b16 %v2284
        %v2345 = vunpack.c.l.b16 %v2285
        %v2346 = vunpack.c.l.b16 %v2286
        %v2347 = vunpack.c.l.b16 %v2287
        %v2348 = vunpack.c.l.b16 %v2288
        %v2349 = vunpack.c.l.b16 %v2289
        %v2350 = vpack.c.b16 %v2335, %v2334
        %v2351 = vpack.c.b16 %v2337, %v2336
        %v2352 = vpack.c.b16 %v2339, %v2338
        %v2353 = vpack.c.b16 %v2341, %v2340
        %v2354 = vpack.c.b16 %v2343, %v2342
        %v2355 = vpack.c.b16 %v2345, %v2344
        %v2356 = vpack.c.b16 %v2347, %v2346
        %v2357 = vpack.c.b16 %v2349, %v2348
        %2366 = vmatpush.bf16.msra.mxu0 %v2357
        %2367 = vmatpush.bf16.msra.mxu0 %v2356
        %2368 = vmatpush.bf16.msra.mxu0 %v2355
        %2369 = vmatpush.bf16.msra.mxu0 %v2354
        %2370 = vmatpush.bf16.msra.mxu0 %v2353
        %2371 = vmatpush.bf16.msra.mxu0 %v2352
        %2372 = vmatpush.bf16.msra.mxu0 %v2351
        %2373 = vmatpush.bf16.msra.mxu0 %v2350
        %2374 = vmatmul.bf16.gmra.mxu0 %v2295
        %v2375 = vpop.f32.mrf.mxu0
        %v2376 = vadd.f32 0.0, %v2375
        %v2377 = vpop.f32.mrf.mxu0
        %v2378 = vadd.f32 0.0, %v2377
        %2379 = vmatmul.bf16.gmra.mxu0 %v2297
        %v2380 = vpop.f32.mrf.mxu0
        %v2381 = vadd.f32 0.0, %v2380
        %v2382 = vpop.f32.mrf.mxu0
        %v2383 = vadd.f32 0.0, %v2382
        %2384 = vmatmul.bf16.gmra.mxu0 %v2299
        %v2385 = vpop.f32.mrf.mxu0
        %v2386 = vadd.f32 0.0, %v2385
        %v2387 = vpop.f32.mrf.mxu0
        %v2388 = vadd.f32 0.0, %v2387
        %2389 = vmatmul.bf16.gmra.mxu0 %v2301
        %v2390 = vpop.f32.mrf.mxu0
        %v2391 = vadd.f32 0.0, %v2390
        %v2392 = vpop.f32.mrf.mxu0
        %v2393 = vadd.f32 0.0, %v2392
        %2394 = vmatmul.bf16.gmra.mxu0 %v2303
        %v2395 = vpop.f32.mrf.mxu0
        %v2396 = vadd.f32 0.0, %v2395
        %v2397 = vpop.f32.mrf.mxu0
        %v2398 = vadd.f32 0.0, %v2397
        %2399 = vmatmul.bf16.gmra.mxu0 %v2305
        %v2400 = vpop.f32.mrf.mxu0
        %v2401 = vadd.f32 0.0, %v2400
        %v2402 = vpop.f32.mrf.mxu0
        %v2403 = vadd.f32 0.0, %v2402
        %2404 = vmatmul.bf16.gmra.mxu0 %v2307
        %v2405 = vpop.f32.mrf.mxu0
        %v2406 = vadd.f32 0.0, %v2405
        %v2407 = vpop.f32.mrf.mxu0
        %v2408 = vadd.f32 0.0, %v2407
        %2409 = vmatmul.bf16.gmra.mxu0 %v2309
        %v2410 = vpop.f32.mrf.mxu0
        %v2411 = vadd.f32 0.0, %v2410
        %v2412 = vpop.f32.mrf.mxu0
        %v2413 = vadd.f32 0.0, %v2412
        %2414 = vdwg.mxu0
        %v2415 = vadd.f32 %v2256, %v2376
        %v2416 = vadd.f32 %v2257, %v2378
        %v2417 = vadd.f32 %v2258, %v2381
        %v2418 = vadd.f32 %v2259, %v2383
        %v2419 = vadd.f32 %v2260, %v2386
        %v2420 = vadd.f32 %v2261, %v2388
        %v2421 = vadd.f32 %v2262, %v2391
        %v2422 = vadd.f32 %v2263, %v2393
        %v2423 = vadd.f32 %v2264, %v2396
        %v2424 = vadd.f32 %v2265, %v2398
        %v2425 = vadd.f32 %v2266, %v2401
        %v2426 = vadd.f32 %v2267, %v2403
        %v2427 = vadd.f32 %v2268, %v2406
        %v2428 = vadd.f32 %v2269, %v2408
        %v2429 = vadd.f32 %v2270, %v2411
        %v2430 = vadd.f32 %v2271, %v2413
        %v2431 = vld [vmem:[#allocation2 + $0x48] sm:$0x7]
        %s2432 = scalar_lea.vmem [#allocation3], 768
        %v2433 = vld [vmem:[%s2432] sm:$0xf]
        %v2434 = vld [vmem:[%s2432 + $0x4] sm:$0xf]
        %v2435 = vld [vmem:[%s2432 + $0x8] sm:$0xf]
        %v2436 = vld [vmem:[%s2432 + $0xc] sm:$0xf]
        %v2437 = vld [vmem:[%s2432 + $0x10] sm:$0xf]
        %v2438 = vld [vmem:[%s2432 + $0x14] sm:$0xf]
        %v2439 = vld [vmem:[%s2432 + $0x18] sm:$0xf]
        %v2440 = vld [vmem:[%s2432 + $0x1c] sm:$0xf]
        %v2441 = vld [vmem:[%s2432 + $0x20] sm:$0xf]
        %v2442 = vld [vmem:[%s2432 + $0x24] sm:$0xf]
        %v2443 = vld [vmem:[%s2432 + $0x28] sm:$0xf]
        %v2444 = vld [vmem:[%s2432 + $0x2c] sm:$0xf]
        %v2445 = vld [vmem:[%s2432 + $0x30] sm:$0xf]
        %v2446 = vld [vmem:[%s2432 + $0x34] sm:$0xf]
        %v2447 = vld [vmem:[%s2432 + $0x38] sm:$0xf]
        %v2448 = vld [vmem:[%s2432 + $0x3c] sm:$0xf]
        %v2450 = vunpack.c.l.b16 %v2431
        %v2451 = vpack.c.b16 %v2450, %v2450
        %v2453 = vshrl.u32 %v2292, 16
        %v2455 = vrot.slane %v2453, 2
        %v2456 = vshll.u32 %v2292, 16
        %v2458 = vrot.slane %v2456, 3
        %v2459 = vor.u32 %v2455, %v2458
        %v2460 = vrot.slane %v1749, 2
        %v2461 = vrot.slane %v1745, 3
        %v2462 = vor.u32 %v2460, %v2461
        %v2463 = vsel %vm999, %v2459, %v2462
        %v2464 = vrot.slane %v1757, 2
        %v2465 = vrot.slane %v1753, 3
        %v2466 = vor.u32 %v2464, %v2465
        %v2467 = vsel %vm999, %v2462, %v2466
        %v2468 = vrot.slane %v1765, 2
        %v2469 = vrot.slane %v1761, 3
        %v2470 = vor.u32 %v2468, %v2469
        %v2471 = vsel %vm999, %v2466, %v2470
        %v2472 = vrot.slane %v1773, 2
        %v2473 = vrot.slane %v1769, 3
        %v2474 = vor.u32 %v2472, %v2473
        %v2475 = vsel %vm999, %v2470, %v2474
        %v2476 = vrot.slane %v1781, 2
        %v2477 = vrot.slane %v1777, 3
        %v2478 = vor.u32 %v2476, %v2477
        %v2479 = vsel %vm999, %v2474, %v2478
        %v2480 = vrot.slane %v1789, 2
        %v2481 = vrot.slane %v1785, 3
        %v2482 = vor.u32 %v2480, %v2481
        %v2483 = vsel %vm999, %v2478, %v2482
        %v2484 = vrot.slane %v1797, 2
        %v2485 = vrot.slane %v1793, 3
        %v2486 = vor.u32 %v2484, %v2485
        %v2487 = vsel %vm999, %v2482, %v2486
        %v2489 = vshrl.u32 %v2451, 16
        %v2491 = vrot.slane %v2489, 2
        %v2492 = vshll.u32 %v2451, 16
        %v2494 = vrot.slane %v2492, 3
        %v2495 = vor.u32 %v2491, %v2494
        %v2496 = vsel %vm999, %v2486, %v2495
        %v2521 = vunpack.c.l.b16 %v2433
        %v2522 = vunpack.c.l.b16 %v2434
        %v2523 = vunpack.c.l.b16 %v2435
        %v2524 = vunpack.c.l.b16 %v2436
        %v2525 = vunpack.c.l.b16 %v2437
        %v2526 = vunpack.c.l.b16 %v2438
        %v2527 = vunpack.c.l.b16 %v2439
        %v2528 = vunpack.c.l.b16 %v2440
        %v2529 = vunpack.c.l.b16 %v2441
        %v2530 = vunpack.c.l.b16 %v2442
        %v2531 = vunpack.c.l.b16 %v2443
        %v2532 = vunpack.c.l.b16 %v2444
        %v2533 = vunpack.c.l.b16 %v2445
        %v2534 = vunpack.c.l.b16 %v2446
        %v2535 = vunpack.c.l.b16 %v2447
        %v2536 = vunpack.c.l.b16 %v2448
        %v2537 = vpack.c.b16 %v2522, %v2521
        %v2538 = vpack.c.b16 %v2524, %v2523
        %v2539 = vpack.c.b16 %v2526, %v2525
        %v2540 = vpack.c.b16 %v2528, %v2527
        %v2541 = vpack.c.b16 %v2530, %v2529
        %v2542 = vpack.c.b16 %v2532, %v2531
        %v2543 = vpack.c.b16 %v2534, %v2533
        %v2544 = vpack.c.b16 %v2536, %v2535
        %2553 = vmatpush.bf16.msra.mxu0 %v2544
        %2554 = vmatpush.bf16.msra.mxu0 %v2543
        %2555 = vmatpush.bf16.msra.mxu0 %v2542
        %2556 = vmatpush.bf16.msra.mxu0 %v2541
        %2557 = vmatpush.bf16.msra.mxu0 %v2540
        %2558 = vmatpush.bf16.msra.mxu0 %v2539
        %2559 = vmatpush.bf16.msra.mxu0 %v2538
        %2560 = vmatpush.bf16.msra.mxu0 %v2537
        %2561 = vmatmul.bf16.gmra.mxu0 %v2463
        %v2562 = vpop.f32.mrf.mxu0
        %v2563 = vadd.f32 0.0, %v2562
        %v2564 = vpop.f32.mrf.mxu0
        %v2565 = vadd.f32 0.0, %v2564
        %2566 = vmatmul.bf16.gmra.mxu0 %v2467
        %v2567 = vpop.f32.mrf.mxu0
        %v2568 = vadd.f32 0.0, %v2567
        %v2569 = vpop.f32.mrf.mxu0
        %v2570 = vadd.f32 0.0, %v2569
        %2571 = vmatmul.bf16.gmra.mxu0 %v2471
        %v2572 = vpop.f32.mrf.mxu0
        %v2573 = vadd.f32 0.0, %v2572
        %v2574 = vpop.f32.mrf.mxu0
        %v2575 = vadd.f32 0.0, %v2574
        %2576 = vmatmul.bf16.gmra.mxu0 %v2475
        %v2577 = vpop.f32.mrf.mxu0
        %v2578 = vadd.f32 0.0, %v2577
        %v2579 = vpop.f32.mrf.mxu0
        %v2580 = vadd.f32 0.0, %v2579
        %2581 = vmatmul.bf16.gmra.mxu0 %v2479
        %v2582 = vpop.f32.mrf.mxu0
        %v2583 = vadd.f32 0.0, %v2582
        %v2584 = vpop.f32.mrf.mxu0
        %v2585 = vadd.f32 0.0, %v2584
        %2586 = vmatmul.bf16.gmra.mxu0 %v2483
        %v2587 = vpop.f32.mrf.mxu0
        %v2588 = vadd.f32 0.0, %v2587
        %v2589 = vpop.f32.mrf.mxu0
        %v2590 = vadd.f32 0.0, %v2589
        %2591 = vmatmul.bf16.gmra.mxu0 %v2487
        %v2592 = vpop.f32.mrf.mxu0
        %v2593 = vadd.f32 0.0, %v2592
        %v2594 = vpop.f32.mrf.mxu0
        %v2595 = vadd.f32 0.0, %v2594
        %2596 = vmatmul.bf16.gmra.mxu0 %v2496
        %v2597 = vpop.f32.mrf.mxu0
        %v2598 = vadd.f32 0.0, %v2597
        %v2599 = vpop.f32.mrf.mxu0
        %v2600 = vadd.f32 0.0, %v2599
        %2601 = vdwg.mxu0
        %v2602 = vadd.f32 %v2415, %v2563
        %v2603 = vadd.f32 %v2416, %v2565
        %v2604 = vadd.f32 %v2417, %v2568
        %v2605 = vadd.f32 %v2418, %v2570
        %v2606 = vadd.f32 %v2419, %v2573
        %v2607 = vadd.f32 %v2420, %v2575
        %v2608 = vadd.f32 %v2421, %v2578
        %v2609 = vadd.f32 %v2422, %v2580
        %v2610 = vadd.f32 %v2423, %v2583
        %v2611 = vadd.f32 %v2424, %v2585
        %v2612 = vadd.f32 %v2425, %v2588
        %v2613 = vadd.f32 %v2426, %v2590
        %v2614 = vadd.f32 %v2427, %v2593
        %v2615 = vadd.f32 %v2428, %v2595
        %v2616 = vadd.f32 %v2429, %v2598
        %v2617 = vadd.f32 %v2430, %v2600
        %v2618 = vld [vmem:[#allocation2 + $0x8] sm:$0x8]
        %s2619 = scalar_lea.vmem [#allocation3], 832
        %v2620 = vld [vmem:[%s2619] sm:$0xf]
        %v2621 = vld [vmem:[%s2619 + $0x4] sm:$0xf]
        %v2622 = vld [vmem:[%s2619 + $0x8] sm:$0xf]
        %v2623 = vld [vmem:[%s2619 + $0xc] sm:$0xf]
        %v2624 = vld [vmem:[%s2619 + $0x10] sm:$0xf]
        %v2625 = vld [vmem:[%s2619 + $0x14] sm:$0xf]
        %v2626 = vld [vmem:[%s2619 + $0x18] sm:$0xf]
        %v2627 = vld [vmem:[%s2619 + $0x1c] sm:$0xf]
        %v2628 = vld [vmem:[%s2619 + $0x20] sm:$0xf]
        %v2629 = vld [vmem:[%s2619 + $0x24] sm:$0xf]
        %v2630 = vld [vmem:[%s2619 + $0x28] sm:$0xf]
        %v2631 = vld [vmem:[%s2619 + $0x2c] sm:$0xf]
        %v2632 = vld [vmem:[%s2619 + $0x30] sm:$0xf]
        %v2633 = vld [vmem:[%s2619 + $0x34] sm:$0xf]
        %v2634 = vld [vmem:[%s2619 + $0x38] sm:$0xf]
        %v2635 = vld [vmem:[%s2619 + $0x3c] sm:$0xf]
        %v2637 = vunpack.c.l.b16 %v2618
        %v2638 = vpack.c.b16 %v1712, %v2637
        %v2639 = vrot.slane %v2638, 3
        %v2640 = vrot.slane %v1729, 3
        %v2641 = vsel %vm1187, %v2639, %v2640
        %v2642 = vrot.slane %v1730, 3
        %v2643 = vsel %vm1187, %v2640, %v2642
        %v2644 = vrot.slane %v1731, 3
        %v2645 = vsel %vm1187, %v2642, %v2644
        %v2646 = vrot.slane %v1732, 3
        %v2647 = vsel %vm1187, %v2644, %v2646
        %v2648 = vrot.slane %v1733, 3
        %v2649 = vsel %vm1187, %v2646, %v2648
        %v2650 = vrot.slane %v1734, 3
        %v2651 = vsel %vm1187, %v2648, %v2650
        %v2652 = vrot.slane %v1735, 3
        %v2653 = vsel %vm1187, %v2650, %v2652
        %v2654 = vrot.slane %v2451, 3
        %v2655 = vsel %vm1187, %v2652, %v2654
        %v2680 = vunpack.c.l.b16 %v2620
        %v2681 = vunpack.c.l.b16 %v2621
        %v2682 = vunpack.c.l.b16 %v2622
        %v2683 = vunpack.c.l.b16 %v2623
        %v2684 = vunpack.c.l.b16 %v2624
        %v2685 = vunpack.c.l.b16 %v2625
        %v2686 = vunpack.c.l.b16 %v2626
        %v2687 = vunpack.c.l.b16 %v2627
        %v2688 = vunpack.c.l.b16 %v2628
        %v2689 = vunpack.c.l.b16 %v2629
        %v2690 = vunpack.c.l.b16 %v2630
        %v2691 = vunpack.c.l.b16 %v2631
        %v2692 = vunpack.c.l.b16 %v2632
        %v2693 = vunpack.c.l.b16 %v2633
        %v2694 = vunpack.c.l.b16 %v2634
        %v2695 = vunpack.c.l.b16 %v2635
        %v2696 = vpack.c.b16 %v2681, %v2680
        %v2697 = vpack.c.b16 %v2683, %v2682
        %v2698 = vpack.c.b16 %v2685, %v2684
        %v2699 = vpack.c.b16 %v2687, %v2686
        %v2700 = vpack.c.b16 %v2689, %v2688
        %v2701 = vpack.c.b16 %v2691, %v2690
        %v2702 = vpack.c.b16 %v2693, %v2692
        %v2703 = vpack.c.b16 %v2695, %v2694
        %2712 = vmatpush.bf16.msra.mxu0 %v2703
        %2713 = vmatpush.bf16.msra.mxu0 %v2702
        %2714 = vmatpush.bf16.msra.mxu0 %v2701
        %2715 = vmatpush.bf16.msra.mxu0 %v2700
        %2716 = vmatpush.bf16.msra.mxu0 %v2699
        %2717 = vmatpush.bf16.msra.mxu0 %v2698
        %2718 = vmatpush.bf16.msra.mxu0 %v2697
        %2719 = vmatpush.bf16.msra.mxu0 %v2696
        %2720 = vmatmul.bf16.gmra.mxu0 %v2641
        %v2721 = vpop.f32.mrf.mxu0
        %v2722 = vadd.f32 0.0, %v2721
        %v2723 = vpop.f32.mrf.mxu0
        %v2724 = vadd.f32 0.0, %v2723
        %2725 = vmatmul.bf16.gmra.mxu0 %v2643
        %v2726 = vpop.f32.mrf.mxu0
        %v2727 = vadd.f32 0.0, %v2726
        %v2728 = vpop.f32.mrf.mxu0
        %v2729 = vadd.f32 0.0, %v2728
        %2730 = vmatmul.bf16.gmra.mxu0 %v2645
        %v2731 = vpop.f32.mrf.mxu0
        %v2732 = vadd.f32 0.0, %v2731
        %v2733 = vpop.f32.mrf.mxu0
        %v2734 = vadd.f32 0.0, %v2733
        %2735 = vmatmul.bf16.gmra.mxu0 %v2647
        %v2736 = vpop.f32.mrf.mxu0
        %v2737 = vadd.f32 0.0, %v2736
        %v2738 = vpop.f32.mrf.mxu0
        %v2739 = vadd.f32 0.0, %v2738
        %2740 = vmatmul.bf16.gmra.mxu0 %v2649
        %v2741 = vpop.f32.mrf.mxu0
        %v2742 = vadd.f32 0.0, %v2741
        %v2743 = vpop.f32.mrf.mxu0
        %v2744 = vadd.f32 0.0, %v2743
        %2745 = vmatmul.bf16.gmra.mxu0 %v2651
        %v2746 = vpop.f32.mrf.mxu0
        %v2747 = vadd.f32 0.0, %v2746
        %v2748 = vpop.f32.mrf.mxu0
        %v2749 = vadd.f32 0.0, %v2748
        %2750 = vmatmul.bf16.gmra.mxu0 %v2653
        %v2751 = vpop.f32.mrf.mxu0
        %v2752 = vadd.f32 0.0, %v2751
        %v2753 = vpop.f32.mrf.mxu0
        %v2754 = vadd.f32 0.0, %v2753
        %2755 = vmatmul.bf16.gmra.mxu0 %v2655
        %v2756 = vpop.f32.mrf.mxu0
        %v2757 = vadd.f32 0.0, %v2756
        %v2758 = vpop.f32.mrf.mxu0
        %v2759 = vadd.f32 0.0, %v2758
        %2760 = vdwg.mxu0
        %v2761 = vadd.f32 %v2602, %v2722
        %v2762 = vadd.f32 %v2603, %v2724
        %v2763 = vadd.f32 %v2604, %v2727
        %v2764 = vadd.f32 %v2605, %v2729
        %v2765 = vadd.f32 %v2606, %v2732
        %v2766 = vadd.f32 %v2607, %v2734
        %v2767 = vadd.f32 %v2608, %v2737
        %v2768 = vadd.f32 %v2609, %v2739
        %v2769 = vadd.f32 %v2610, %v2742
        %v2770 = vadd.f32 %v2611, %v2744
        %v2771 = vadd.f32 %v2612, %v2747
        %v2772 = vadd.f32 %v2613, %v2749
        %v2773 = vadd.f32 %v2614, %v2752
        %v2774 = vadd.f32 %v2615, %v2754
        %v2775 = vadd.f32 %v2616, %v2757
        %v2776 = vadd.f32 %v2617, %v2759
        %v2777 = vld [vmem:[#allocation2 + $0x48] sm:$0xf]
        %s2778 = scalar_lea.vmem [#allocation3], 896
        %v2779 = vld [vmem:[%s2778] sm:$0xf]
        %v2780 = vld [vmem:[%s2778 + $0x4] sm:$0xf]
        %v2781 = vld [vmem:[%s2778 + $0x8] sm:$0xf]
        %v2782 = vld [vmem:[%s2778 + $0xc] sm:$0xf]
        %v2783 = vld [vmem:[%s2778 + $0x10] sm:$0xf]
        %v2784 = vld [vmem:[%s2778 + $0x14] sm:$0xf]
        %v2785 = vld [vmem:[%s2778 + $0x18] sm:$0xf]
        %v2786 = vld [vmem:[%s2778 + $0x1c] sm:$0xf]
        %v2787 = vld [vmem:[%s2778 + $0x20] sm:$0xf]
        %v2788 = vld [vmem:[%s2778 + $0x24] sm:$0xf]
        %v2789 = vld [vmem:[%s2778 + $0x28] sm:$0xf]
        %v2790 = vld [vmem:[%s2778 + $0x2c] sm:$0xf]
        %v2791 = vld [vmem:[%s2778 + $0x30] sm:$0xf]
        %v2792 = vld [vmem:[%s2778 + $0x34] sm:$0xf]
        %v2793 = vld [vmem:[%s2778 + $0x38] sm:$0xf]
        %v2794 = vld [vmem:[%s2778 + $0x3c] sm:$0xf]
        %v2796 = vunpack.c.l.b16 %v2777
        %v2797 = vpack.c.b16 %v2796, %v2796
        %v2799 = vshrl.u32 %v2638, 16
        %v2801 = vrot.slane %v2799, 3
        %v2802 = vshll.u32 %v2638, 16
        %v2804 = vrot.slane %v2802, 4
        %v2805 = vor.u32 %v2801, %v2804
        %v2806 = vrot.slane %v1749, 3
        %v2807 = vrot.slane %v1745, 4
        %v2808 = vor.u32 %v2806, %v2807
        %v2809 = vsel %vm1347, %v2805, %v2808
        %v2810 = vrot.slane %v1757, 3
        %v2811 = vrot.slane %v1753, 4
        %v2812 = vor.u32 %v2810, %v2811
        %v2813 = vsel %vm1347, %v2808, %v2812
        %v2814 = vrot.slane %v1765, 3
        %v2815 = vrot.slane %v1761, 4
        %v2816 = vor.u32 %v2814, %v2815
        %v2817 = vsel %vm1347, %v2812, %v2816
        %v2818 = vrot.slane %v1773, 3
        %v2819 = vrot.slane %v1769, 4
        %v2820 = vor.u32 %v2818, %v2819
        %v2821 = vsel %vm1347, %v2816, %v2820
        %v2822 = vrot.slane %v1781, 3
        %v2823 = vrot.slane %v1777, 4
        %v2824 = vor.u32 %v2822, %v2823
        %v2825 = vsel %vm1347, %v2820, %v2824
        %v2826 = vrot.slane %v1789, 3
        %v2827 = vrot.slane %v1785, 4
        %v2828 = vor.u32 %v2826, %v2827
        %v2829 = vsel %vm1347, %v2824, %v2828
        %v2830 = vrot.slane %v1797, 3
        %v2831 = vrot.slane %v1793, 4
        %v2832 = vor.u32 %v2830, %v2831
        %v2833 = vsel %vm1347, %v2828, %v2832
        %v2835 = vshrl.u32 %v2797, 16
        %v2837 = vrot.slane %v2835, 3
        %v2838 = vshll.u32 %v2797, 16
        %v2840 = vrot.slane %v2838, 4
        %v2841 = vor.u32 %v2837, %v2840
        %v2842 = vsel %vm1347, %v2832, %v2841
        %v2867 = vunpack.c.l.b16 %v2779
        %v2868 = vunpack.c.l.b16 %v2780
        %v2869 = vunpack.c.l.b16 %v2781
        %v2870 = vunpack.c.l.b16 %v2782
        %v2871 = vunpack.c.l.b16 %v2783
        %v2872 = vunpack.c.l.b16 %v2784
        %v2873 = vunpack.c.l.b16 %v2785
        %v2874 = vunpack.c.l.b16 %v2786
        %v2875 = vunpack.c.l.b16 %v2787
        %v2876 = vunpack.c.l.b16 %v2788
        %v2877 = vunpack.c.l.b16 %v2789
        %v2878 = vunpack.c.l.b16 %v2790
        %v2879 = vunpack.c.l.b16 %v2791
        %v2880 = vunpack.c.l.b16 %v2792
        %v2881 = vunpack.c.l.b16 %v2793
        %v2882 = vunpack.c.l.b16 %v2794
        %v2883 = vpack.c.b16 %v2868, %v2867
        %v2884 = vpack.c.b16 %v2870, %v2869
        %v2885 = vpack.c.b16 %v2872, %v2871
        %v2886 = vpack.c.b16 %v2874, %v2873
        %v2887 = vpack.c.b16 %v2876, %v2875
        %v2888 = vpack.c.b16 %v2878, %v2877
        %v2889 = vpack.c.b16 %v2880, %v2879
        %v2890 = vpack.c.b16 %v2882, %v2881
        %2899 = vmatpush.bf16.msra.mxu0 %v2890
        %2900 = vmatpush.bf16.msra.mxu0 %v2889
        %2901 = vmatpush.bf16.msra.mxu0 %v2888
        %2902 = vmatpush.bf16.msra.mxu0 %v2887
        %2903 = vmatpush.bf16.msra.mxu0 %v2886
        %2904 = vmatpush.bf16.msra.mxu0 %v2885
        %2905 = vmatpush.bf16.msra.mxu0 %v2884
        %2906 = vmatpush.bf16.msra.mxu0 %v2883
        %2907 = vmatmul.bf16.gmra.mxu0 %v2809
        %v2908 = vpop.f32.mrf.mxu0
        %v2909 = vadd.f32 0.0, %v2908
        %v2910 = vpop.f32.mrf.mxu0
        %v2911 = vadd.f32 0.0, %v2910
        %2912 = vmatmul.bf16.gmra.mxu0 %v2813
        %v2913 = vpop.f32.mrf.mxu0
        %v2914 = vadd.f32 0.0, %v2913
        %v2915 = vpop.f32.mrf.mxu0
        %v2916 = vadd.f32 0.0, %v2915
        %2917 = vmatmul.bf16.gmra.mxu0 %v2817
        %v2918 = vpop.f32.mrf.mxu0
        %v2919 = vadd.f32 0.0, %v2918
        %v2920 = vpop.f32.mrf.mxu0
        %v2921 = vadd.f32 0.0, %v2920
        %2922 = vmatmul.bf16.gmra.mxu0 %v2821
        %v2923 = vpop.f32.mrf.mxu0
        %v2924 = vadd.f32 0.0, %v2923
        %v2925 = vpop.f32.mrf.mxu0
        %v2926 = vadd.f32 0.0, %v2925
        %2927 = vmatmul.bf16.gmra.mxu0 %v2825
        %v2928 = vpop.f32.mrf.mxu0
        %v2929 = vadd.f32 0.0, %v2928
        %v2930 = vpop.f32.mrf.mxu0
        %v2931 = vadd.f32 0.0, %v2930
        %2932 = vmatmul.bf16.gmra.mxu0 %v2829
        %v2933 = vpop.f32.mrf.mxu0
        %v2934 = vadd.f32 0.0, %v2933
        %v2935 = vpop.f32.mrf.mxu0
        %v2936 = vadd.f32 0.0, %v2935
        %2937 = vmatmul.bf16.gmra.mxu0 %v2833
        %v2938 = vpop.f32.mrf.mxu0
        %v2939 = vadd.f32 0.0, %v2938
        %v2940 = vpop.f32.mrf.mxu0
        %v2941 = vadd.f32 0.0, %v2940
        %2942 = vmatmul.bf16.gmra.mxu0 %v2842
        %v2943 = vpop.f32.mrf.mxu0
        %v2944 = vadd.f32 0.0, %v2943
        %v2945 = vpop.f32.mrf.mxu0
        %v2946 = vadd.f32 0.0, %v2945
        %2947 = vdwg.mxu0
        %v2948 = vadd.f32 %v2761, %v2909
        %v2949 = vadd.f32 %v2762, %v2911
        %v2950 = vadd.f32 %v2763, %v2914
        %v2951 = vadd.f32 %v2764, %v2916
        %v2952 = vadd.f32 %v2765, %v2919
        %v2953 = vadd.f32 %v2766, %v2921
        %v2954 = vadd.f32 %v2767, %v2924
        %v2955 = vadd.f32 %v2768, %v2926
        %v2956 = vadd.f32 %v2769, %v2929
        %v2957 = vadd.f32 %v2770, %v2931
        %v2958 = vadd.f32 %v2771, %v2934
        %v2959 = vadd.f32 %v2772, %v2936
        %v2960 = vadd.f32 %v2773, %v2939
        %v2961 = vadd.f32 %v2774, %v2941
        %v2962 = vadd.f32 %v2775, %v2944
        %v2963 = vadd.f32 %v2776, %v2946
        %2964 = vst [vmem:[%s194] sm:$0xff] %v2948
        %2965 = vst [vmem:[%s194 + $0x8] sm:$0xff] %v2949
        %2966 = vst [vmem:[%s194 + $0x10] sm:$0xff] %v2950
        %2967 = vst [vmem:[%s194 + $0x18] sm:$0xff] %v2951
        %2968 = vst [vmem:[%s194 + $0x20] sm:$0xff] %v2952
        %2969 = vst [vmem:[%s194 + $0x28] sm:$0xff] %v2953
        %2970 = vst [vmem:[%s194 + $0x30] sm:$0xff] %v2954
        %2971 = vst [vmem:[%s194 + $0x38] sm:$0xff] %v2955
        %2972 = vst [vmem:[%s194 + $0x40] sm:$0xff] %v2956
        %2973 = vst [vmem:[%s194 + $0x48] sm:$0xff] %v2957
        %2974 = vst [vmem:[%s194 + $0x50] sm:$0xff] %v2958
        %2975 = vst [vmem:[%s194 + $0x58] sm:$0xff] %v2959
        %2976 = vst [vmem:[%s194 + $0x60] sm:$0xff] %v2960
        %2977 = vst [vmem:[%s194 + $0x68] sm:$0xff] %v2961
        %2978 = vst [vmem:[%s194 + $0x70] sm:$0xff] %v2962
        %2979 = vst [vmem:[%s194 + $0x78] sm:$0xff] %v2963
        %vm2980 = vcmp.lt.f32.partialorder %v2948, 0.6
        %vm2981 = vcmp.lt.f32.partialorder %v2949, 0.6
        %vm2982 = vcmp.lt.f32.partialorder %v2950, 0.6
        %vm2983 = vcmp.lt.f32.partialorder %v2951, 0.6
        %vm2984 = vcmp.lt.f32.partialorder %v2952, 0.6
        %vm2985 = vcmp.lt.f32.partialorder %v2953, 0.6
        %vm2986 = vcmp.lt.f32.partialorder %v2954, 0.6
        %vm2987 = vcmp.lt.f32.partialorder %v2955, 0.6
        %vm2988 = vcmp.lt.f32.partialorder %v2956, 0.6
        %vm2989 = vcmp.lt.f32.partialorder %v2957, 0.6
        %vm2990 = vcmp.lt.f32.partialorder %v2958, 0.6
        %vm2991 = vcmp.lt.f32.partialorder %v2959, 0.6
        %vm2992 = vcmp.lt.f32.partialorder %v2960, 0.6
        %vm2993 = vcmp.lt.f32.partialorder %v2961, 0.6
        %vm2994 = vcmp.lt.f32.partialorder %v2962, 0.6
        %vm2995 = vcmp.lt.f32.partialorder %v2963, 0.6
        %v2996 = vsel %vm2980, %v2948, -inf
        %v2997 = vsel %vm2981, %v2949, -inf
        %v2998 = vsel %vm2982, %v2950, -inf
        %v2999 = vsel %vm2983, %v2951, -inf
        %v3000 = vsel %vm2984, %v2952, -inf
        %v3001 = vsel %vm2985, %v2953, -inf
        %v3002 = vsel %vm2986, %v2954, -inf
        %v3003 = vsel %vm2987, %v2955, -inf
        %v3004 = vsel %vm2988, %v2956, -inf
        %v3005 = vsel %vm2989, %v2957, -inf
        %v3006 = vsel %vm2990, %v2958, -inf
        %v3007 = vsel %vm2991, %v2959, -inf
        %v3008 = vsel %vm2992, %v2960, -inf
        %v3009 = vsel %vm2993, %v2961, -inf
        %v3010 = vsel %vm2994, %v2962, -inf
        %v3011 = vsel %vm2995, %v2963, -inf
        %v3012 = vmax.f32 %v2996, %v2997
        %v3013 = vmax.f32 %v3012, %v2998
        %v3014 = vmax.f32 %v3013, %v2999
        %v3015 = vmax.f32 %v3014, %v3000
        %v3016 = vmax.f32 %v3015, %v3001
        %v3017 = vmax.f32 %v3016, %v3002
        %v3018 = vmax.f32 %v3017, %v3003
        %v3019 = vmax.f32 %v3018, %v3004
        %v3020 = vmax.f32 %v3019, %v3005
        %v3021 = vmax.f32 %v3020, %v3006
        %v3022 = vmax.f32 %v3021, %v3007
        %v3023 = vmax.f32 %v3022, %v3008
        %v3024 = vmax.f32 %v3023, %v3009
        %v3025 = vmax.f32 %v3024, %v3010
        %v3026 = vmax.f32 %v3025, %v3011
        %3027 = vst [vmem:[%s198] sm:$0xff] %v3026
        %p3028 = scmp.lt.s32.totalorder %s16, 1
        %s3029 = scalar_select %p3028, %s16, 1
        %s3030 = smul.addr %s3029, 16
        %s3031 = smul.addr %s3030, 8
        %s3032 = scalar_lea.vmem %s2, %s3031
        %p3033 = scmp.lt.s32.totalorder %s16, 1
        %s3034 = scalar_select %p3033, %s16, 1
        %s3035 = smul.addr %s3034, 8
        %s3036 = scalar_lea.vmem %s3, %s3035
        // Predicated region
        $region33: #{soft_erosion.1} parent=27 // pred_check
          %p3037 = pneg %p81
        $region34: #{soft_erosion.1} parent=27 // pred_check_branch
          %3039 = sbr.rel (%p3037) target = $region36
        $region35: #{soft_erosion.1} parent=27 // pred_region
          _
        $region36: #{soft_erosion.1} parent=27 // pred_fallthru
          _
        // Predicated region
        $region37: #{soft_erosion.1} parent=27 // pred_check
          %p3040 = pneg %p107
        $region38: #{soft_erosion.1} parent=27 // pred_check_branch
          %3042 = sbr.rel (%p3040) target = $region40
        $region39: #{soft_erosion.1} parent=27 // pred_region
          _
        $region40: #{soft_erosion.1} parent=27 // pred_fallthru
          _
      $region28: #{soft_erosion.1} parent=5 // pred_fallthru
        _
      %p3043 = scmp.le.s32.totalorder 2, %s11
      // Predicated region
      $region41: #{soft_erosion.1} parent=5 // pred_check
        %p3044 = pneg %p3043
      $region42: #{soft_erosion.1} parent=5 // pred_check_branch
        %3046 = sbr.rel (%p3044) target = $region44
      $region43: #{soft_erosion.1} parent=5 // pred_region
        %s3047 = ssub.s32 %s11, 2
        // Predicated region
        $region45: #{soft_erosion.1} parent=43 // pred_check
          %p3048 = pneg %p87
        $region46: #{soft_erosion.1} parent=43 // pred_check_branch
          %3050 = sbr.rel (%p3048) target = $region48
        $region47: #{soft_erosion.1} parent=43 // pred_region
          %p3051 = scmp.lt.s32.totalorder %s17, 1
          %s3052 = scalar_select %p3051, %s17, 1
          %s3053 = smul.addr %s3052, 16
          %s3054 = smul.addr %s3053, 8
          %s3055 = scalar_lea.vmem %s2, %s3054
        $region48: #{soft_erosion.1} parent=43 // pred_fallthru
          _
        // Predicated region
        $region49: #{soft_erosion.1} parent=43 // pred_check
          %p3056 = pneg %p113
        $region50: #{soft_erosion.1} parent=43 // pred_check_branch
          %3058 = sbr.rel (%p3056) target = $region52
        $region51: #{soft_erosion.1} parent=43 // pred_region
          %p3059 = scmp.lt.s32.totalorder %s17, 1
          %s3060 = scalar_select %p3059, %s17, 1
          %s3061 = smul.addr %s3060, 8
          %s3062 = scalar_lea.vmem %s3, %s3061
        $region52: #{soft_erosion.1} parent=43 // pred_fallthru
          _
      $region44: #{soft_erosion.1} parent=5 // pred_fallthru
        _
    $region6: #{soft_erosion.1} parent=1 // loop_footer
      %s15 = sadd.s32 1, %s11
    $region7: #{soft_erosion.1} parent=1 // loop_footer_branch
      %10 = sbr.rel target = $region3
    $region8: #{soft_erosion.1} parent=1 // loop_exit
      _
    %3063 = vsyncpa [#allocation4], 1
    %s3064 = scalar_lea.sflag [#allocation4], 1
    %3065 = vsyncpa %s3064, 1

</llo_original>
